<compile_context>
chip_gen: v6e
topology: v6e:2x2x1
jax: 0.10.0
libtpu: 0.0.40
codegen_flags: <defaults>
</compile_context>

<pallas_src>
import functools

import jax
import jax.numpy as jnp
import numpy as np
from jax import lax
from jax.experimental import pallas as pl
from jax.experimental.pallas import tpu as pltpu


def _gated_xattn_kernel(x_ref, k_ref, v_ref, ln_w_ref, ln_b_ref,
                        wq_t_ref, bq_ref, wo_t_ref, bo_ref, gate_ref,
                        o_ref, q_scr, att_scr,
                        *, n_head: int, eps: float, compute_dtype):
    f32 = jnp.float32
    D = x_ref.shape[-1]
    Dh = D // n_head

    # ---- LayerNorm in float32 (the PyTorch LayerNorm wrapper casts to float).
    x = x_ref[0].astype(f32)                                              # (tT, D)
    mean = jnp.mean(x, axis=-1, keepdims=True)
    var = jnp.mean(jnp.square(x - mean), axis=-1, keepdims=True)
    x_ln = (x - mean) * lax.rsqrt(var + eps) * ln_w_ref[0] + ln_b_ref[0]

    # ---- Q projection (Dh**-0.5 scale already folded into wq_t / bq by the wrapper).
    # Written to VMEM scratch so the head loop slices a ref instead of keeping the
    # whole (tT, D) value live across all heads.
    q_scr[...] = (jnp.dot(x_ln.astype(compute_dtype), wq_t_ref[...],
                          preferred_element_type=f32) + bq_ref[0]).astype(compute_dtype)

    # ---- Per-head attention; heads are contiguous Dh-wide slices of the last dim.
    # Ref-slicing keeps only a Dh-wide slab of q/k/v live per iteration.
    # TODO(synk): for very large n_head switch to lax.fori_loop over heads to keep the
    # unrolled instruction stream small (identical semantics / FLOPs).
    for h in range(n_head):
        sl = slice(h * Dh, (h + 1) * Dh)
        qh = q_scr[:, sl]                                                 # (tT, Dh)
        kh = k_ref[0, :, sl]                                              # (S,  Dh)
        vh = v_ref[0, :, sl]                                              # (S,  Dh)
        # q @ k.T as a contraction on the last dims -> no materialized transpose.
        qk = lax.dot_general(qh, kh, (((1,), (1,)), ((), ())),
                             preferred_element_type=f32)                  # (tT, S)
        qk = qk - jnp.max(qk, axis=-1, keepdims=True)
        # TODO(synk): exp in bf16 on v6e/v7x if profiling shows the EUP slot saturated
        # (not valid on v5e: no bf16 EUP); kept in f32 here for portability.
        p = jnp.exp(qk)
        p = p * pl.reciprocal(jnp.sum(p, axis=-1, keepdims=True), approx=True)
        att_scr[:, sl] = jnp.dot(p.astype(compute_dtype), vh,
                                 preferred_element_type=f32).astype(compute_dtype)

    # ---- Output projection + (pre-computed, SMEM-resident) tanh gate.
    out = jnp.dot(att_scr[...], wo_t_ref[...], preferred_element_type=f32) + bo_ref[0]
    o_ref[0] = (out * gate_ref[0, 0]).astype(o_ref.dtype)


def gated_xattn_subblock(x, xt, params, *, n_head: int, eps: float = 1e-5,
                         compute_dtype=jnp.bfloat16, t_tile=None):
    B, T, D = x.shape
    _, S, _ = xt.shape
    assert D % n_head == 0
    Dh = D // n_head

    if t_tile is None:
        # NOTE: 256 is also a good choice on the 128-MiB-VMEM parts (v5e/v6e) when T
        # is large; 128 keeps the footprint comfortable on v7x (64 MiB).
        t_tile = T if T <= 128 else 128
    assert t_tile == T or t_tile % 8 == 0, "T tile must be a multiple of 8 (or the full T)"
    nT = -(-T // t_tile)
    T_pad = nT * t_tile

    f32 = jnp.float32
    cdt = compute_dtype

    # Fold the attention scale into the Q projection: the module applies Dh**-0.25 to
    # both q and k, which is equivalent to scaling q (weights + bias) by Dh**-0.5.
    scale = float(Dh) ** (-0.5)

    ln_w = params["ln_w"].reshape(1, D).astype(f32)
    ln_b = params["ln_b"].reshape(1, D).astype(f32)
    wq_t = (params["wq"].T * scale).astype(cdt)
    bq = (params["bq"] * scale).reshape(1, D).astype(f32)
    wo_t = params["wo"].T.astype(cdt)
    bo = params["bo"].reshape(1, D).astype(f32)
    # tanh(gate) once in the wrapper: the kernel reads a single SMEM scalar.
    gate = jnp.tanh(params["gate"].astype(f32)).reshape(1, 1)

    # K/V projections hoisted to plain XLA GEMMs (compute_dtype operands, f32 acc),
    # stored in compute_dtype: half the K/V HBM traffic vs f32 xt, no serial in-kernel
    # projection bubble, no cross-T-tile scratch state to keep consistent.
    xt_c = xt.astype(cdt)
    k = jnp.dot(xt_c, params["wk"].T.astype(cdt), preferred_element_type=f32).astype(cdt)
    v = (jnp.dot(xt_c, params["wv"].T.astype(cdt), preferred_element_type=f32)
         + params["bv"].astype(f32)).astype(cdt)

    # Pad T up to a tile multiple (e.g. Whisper T=448 with a 128 tile); sliced off below.
    x_in = x if T_pad == T else jnp.pad(x, ((0, 0), (0, T_pad - T), (0, 0)))

    def fixed(shape):
        return pl.BlockSpec(shape, lambda b, t: (0,) * len(shape))

    # Whole-array, single-buffered VMEM residency for the never-changing (D, D) weights
    # (index never changes, so double-buffering would only waste VMEM).
    vmem_full = pl.BlockSpec(memory_space=pltpu.MemorySpace.VMEM)
    smem_full = pl.BlockSpec(memory_space=pltpu.MemorySpace.SMEM)

    kernel = functools.partial(_gated_xattn_kernel, n_head=n_head, eps=eps,
                               compute_dtype=cdt)

    out = pl.pallas_call(
        kernel,
        out_shape=jax.ShapeDtypeStruct((B, T_pad, D), x.dtype),
        grid_spec=pltpu.PrefetchScalarGridSpec(
            num_scalar_prefetch=0,
            grid=(B, nT),
            in_specs=[
                pl.BlockSpec((1, t_tile, D), lambda b, t: (b, t, 0)),  # x tile
                pl.BlockSpec((1, S, D), lambda b, t: (b, 0, 0)),       # K (per batch)
                pl.BlockSpec((1, S, D), lambda b, t: (b, 0, 0)),       # V (per batch)
                fixed((1, D)),                                         # ln_w
                fixed((1, D)),                                         # ln_b
                vmem_full,                                             # wq^T * scale
                fixed((1, D)),                                         # bq * scale
                vmem_full,                                             # wo^T
                fixed((1, D)),                                         # bo
                smem_full,                                             # tanh(gate) scalar
            ],
            out_specs=pl.BlockSpec((1, t_tile, D), lambda b, t: (b, t, 0)),
            scratch_shapes=[
                pltpu.VMEM((t_tile, D), cdt),   # Q projection (ref-sliced per head)
                pltpu.VMEM((t_tile, D), cdt),   # concatenated per-head outputs
            ],
        ),
        compiler_params=pltpu.CompilerParams(
            # No cross-iteration state -> both axes parallel (v7x megacore works at B=1).
            dimension_semantics=("parallel", "parallel"),
            vmem_limit_bytes=40 * 1024 * 1024,
        ),
    )(x_in, k, v, ln_w, ln_b, wq_t, bq, wo_t, bo, gate)

    return out if T_pad == T else out[:, :T]


def reference(x, xt, params, *, n_head: int, eps: float = 1e-5):
    """Pure-JAX port of the PyTorch forward pass, for verification."""
    B, T, D = x.shape
    S = xt.shape[1]
    Dh = D // n_head
    scale = float(Dh) ** (-0.25)

    xf = x.astype(jnp.float32)
    mean = xf.mean(-1, keepdims=True)
    var = ((xf - mean) ** 2).mean(-1, keepdims=True)
    x_ln = (xf - mean) / jnp.sqrt(var + eps) * params["ln_w"] + params["ln_b"]

    q = x_ln @ params["wq"].T + params["bq"]
    k = xt @ params["wk"].T
    v = xt @ params["wv"].T + params["bv"]

    qh = q.reshape(B, T, n_head, Dh).transpose(0, 2, 1, 3) * scale
    kh = k.reshape(B, S, n_head, Dh).transpose(0, 2, 3, 1) * scale
    vh = v.reshape(B, S, n_head, Dh).transpose(0, 2, 1, 3)
    qk = qh @ kh
    w = jax.nn.softmax(qk.astype(jnp.float32), axis=-1)
    wv = (w @ vh).transpose(0, 2, 1, 3).reshape(B, T, D)
    out = wv @ params["wo"].T + params["bo"]
    return out * jnp.tanh(params["gate"])


if __name__ == "__main__":
    B, T, S, D, H = 2, 8, 16, 32, 4

    key = jax.random.PRNGKey(0)
    keys = jax.random.split(key, 12)
    params = {
        "ln_w": jnp.ones((D,), jnp.float32) + 0.05 * jax.random.normal(keys[0], (D,)),
        "ln_b": 0.05 * jax.random.normal(keys[1], (D,)),
        "wq": 0.1 * jax.random.normal(keys[2], (D, D)),
        "bq": 0.05 * jax.random.normal(keys[3], (D,)),
        "wk": 0.1 * jax.random.normal(keys[4], (D, D)),
        "wv": 0.1 * jax.random.normal(keys[5], (D, D)),
        "bv": 0.05 * jax.random.normal(keys[6], (D,)),
        "wo": 0.1 * jax.random.normal(keys[7], (D, D)),
        "bo": 0.05 * jax.random.normal(keys[8], (D,)),
        # Module initializes the gate to 0.0 (output would be all-zero);
        # use a nonzero deterministic value so the kernel path is exercised.
        "gate": jnp.array([0.3], jnp.float32),
    }

    x = jax.random.normal(keys[9], (B, T, D), jnp.float32)
    xt = jax.random.normal(keys[10], (B, S, D), jnp.float32)

    ref = jax.block_until_ready(reference(x, xt, params, n_head=H))

    # f32-MXU path: near-exact vs. the f32 reference (only approx-reciprocal differs).
    out_f32 = jax.block_until_ready(
        gated_xattn_subblock(x, xt, params, n_head=H, compute_dtype=jnp.float32))
    np.testing.assert_allclose(np.asarray(out_f32), np.asarray(ref), rtol=1e-2, atol=1e-3)

    # bf16-MXU path (default; the fast path on v5e/v6e/v7x): looser tolerance.
    out_bf16 = jax.block_until_ready(
        gated_xattn_subblock(x, xt, params, n_head=H))
    np.testing.assert_allclose(np.asarray(out_bf16), np.asarray(ref), rtol=2e-2, atol=5e-3)

    # Non-divisible T exercises the wrapper padding + output slice path (f32 for a
    # tight numerical check).
    T2 = 11
    x2 = jax.random.normal(keys[11], (B, T2, D), jnp.float32)
    ref2 = jax.block_until_ready(reference(x2, xt, params, n_head=H))
    out2 = jax.block_until_ready(
        gated_xattn_subblock(x2, xt, params, n_head=H,
                             compute_dtype=jnp.float32, t_tile=8))
    np.testing.assert_allclose(np.asarray(out2), np.asarray(ref2), rtol=1e-2, atol=1e-3)

    print("KERNEL_OK")
</pallas_src>

<mosaic_0001>
module attributes {stable_mosaic.version = 11 : i64} {
  func.func @_gated_xattn_kernel(%arg0: i32, %arg1: i32, %arg2: memref<1x8x32xf32, #tpu.memory_space<vmem>>, %arg3: memref<1x16x32xf32, #tpu.memory_space<vmem>>, %arg4: memref<1x16x32xf32, #tpu.memory_space<vmem>>, %arg5: memref<1x32xf32, #tpu.memory_space<vmem>>, %arg6: memref<1x32xf32, #tpu.memory_space<vmem>>, %arg7: memref<32x32xf32, #tpu.memory_space<vmem>>, %arg8: memref<1x32xf32, #tpu.memory_space<vmem>>, %arg9: memref<32x32xf32, #tpu.memory_space<vmem>>, %arg10: memref<1x32xf32, #tpu.memory_space<vmem>>, %arg11: memref<1x1xf32, #tpu.memory_space<smem>>, %arg12: memref<1x8x32xf32, #tpu.memory_space<vmem>>, %arg13: memref<8x32xf32, #tpu.memory_space<vmem>>, %arg14: memref<8x32xf32, #tpu.memory_space<vmem>>) attributes {dimension_semantics = [#tpu.dimension_semantics<parallel>, #tpu.dimension_semantics<parallel>], iteration_bounds = array<i64: 2, 1>, scalar_prefetch = 0 : i64, scratch_operands = 2 : i64, tpu.core_type = #tpu.core_type<tc>, window_params = [{transform_indices = @transform_0, window_bounds = array<i64: 1, 8, 32>}, {transform_indices = @transform_1, window_bounds = array<i64: 1, 16, 32>}, {transform_indices = @transform_2, window_bounds = array<i64: 1, 16, 32>}, {pipeline_mode = #tpu.pipeline_mode<synchronous>, transform_indices = @transform_3, window_bounds = array<i64: 1, 32>}, {pipeline_mode = #tpu.pipeline_mode<synchronous>, transform_indices = @transform_4, window_bounds = array<i64: 1, 32>}, {pipeline_mode = #tpu.pipeline_mode<synchronous>, transform_indices = @transform_5, window_bounds = array<i64: 32, 32>}, {pipeline_mode = #tpu.pipeline_mode<synchronous>, transform_indices = @transform_6, window_bounds = array<i64: 1, 32>}, {pipeline_mode = #tpu.pipeline_mode<synchronous>, transform_indices = @transform_7, window_bounds = array<i64: 32, 32>}, {pipeline_mode = #tpu.pipeline_mode<synchronous>, transform_indices = @transform_8, window_bounds = array<i64: 1, 32>}, {transform_indices = @transform_9, window_bounds = array<i64: 1, 1>}, {transform_indices = @transform_10, window_bounds = array<i64: 1, 8, 32>}]} {
    %c0 = arith.constant 0 : index
    %c0_0 = arith.constant 0 : index
    %c0_1 = arith.constant 0 : index
    %0 = vector.load %arg2[%c0, %c0_0, %c0_1] : memref<1x8x32xf32, #tpu.memory_space<vmem>>, vector<1x8x32xf32>
    %1 = vector.shape_cast %0 : vector<1x8x32xf32> to vector<8x32xf32>
    %cst = arith.constant dense<0.000000e+00> : vector<8xf32>
    %2 = vector.multi_reduction <add>, %1, %cst [1] : vector<8x32xf32> to vector<8xf32>
    %3 = vector.shape_cast %2 : vector<8xf32> to vector<8x1xf32>
    %cst_2 = arith.constant 3.200000e+01 : f32
    %4 = vector.broadcast %cst_2 : f32 to vector<8x1xf32>
    %5 = arith.divf %3, %4 : vector<8x1xf32>
    %6 = vector.broadcast %5 : vector<8x1xf32> to vector<8x32xf32>
    %7 = arith.subf %1, %6 : vector<8x32xf32>
    %8 = arith.mulf %7, %7 : vector<8x32xf32>
    %cst_3 = arith.constant dense<0.000000e+00> : vector<8xf32>
    %9 = vector.multi_reduction <add>, %8, %cst_3 [1] : vector<8x32xf32> to vector<8xf32>
    %10 = vector.shape_cast %9 : vector<8xf32> to vector<8x1xf32>
    %cst_4 = arith.constant 3.200000e+01 : f32
    %11 = vector.broadcast %cst_4 : f32 to vector<8x1xf32>
    %12 = arith.divf %10, %11 : vector<8x1xf32>
    %13 = vector.broadcast %5 : vector<8x1xf32> to vector<8x32xf32>
    %14 = arith.subf %1, %13 : vector<8x32xf32>
    %cst_5 = arith.constant 9.99999974E-6 : f32
    %15 = vector.broadcast %cst_5 : f32 to vector<8x1xf32>
    %16 = arith.addf %12, %15 : vector<8x1xf32>
    %17 = math.rsqrt %16 : vector<8x1xf32>
    %18 = vector.broadcast %17 : vector<8x1xf32> to vector<8x32xf32>
    %19 = arith.mulf %14, %18 : vector<8x32xf32>
    %c0_6 = arith.constant 0 : index
    %c0_7 = arith.constant 0 : index
    %20 = vector.load %arg5[%c0_6, %c0_7] : memref<1x32xf32, #tpu.memory_space<vmem>>, vector<1x32xf32>
    %21 = vector.shape_cast %20 : vector<1x32xf32> to vector<32xf32>
    %22 = vector.shape_cast %21 : vector<32xf32> to vector<1x32xf32>
    %23 = vector.broadcast %22 : vector<1x32xf32> to vector<8x32xf32>
    %24 = arith.mulf %19, %23 : vector<8x32xf32>
    %c0_8 = arith.constant 0 : index
    %c0_9 = arith.constant 0 : index
    %25 = vector.load %arg6[%c0_8, %c0_9] : memref<1x32xf32, #tpu.memory_space<vmem>>, vector<1x32xf32>
    %26 = vector.shape_cast %25 : vector<1x32xf32> to vector<32xf32>
    %27 = vector.shape_cast %26 : vector<32xf32> to vector<1x32xf32>
    %28 = vector.broadcast %27 : vector<1x32xf32> to vector<8x32xf32>
    %29 = arith.addf %24, %28 : vector<8x32xf32>
    %c0_10 = arith.constant 0 : index
    %c0_11 = arith.constant 0 : index
    %30 = vector.load %arg7[%c0_10, %c0_11] : memref<32x32xf32, #tpu.memory_space<vmem>>, vector<32x32xf32>
    %cst_12 = arith.constant dense<0.000000e+00> : vector<8x32xf32>
    %31 = tpu.matmul %29, %30, %cst_12 {dimension_numbers = #tpu.dot_dimension_numbers<[1], [0], [0], [1], [0, 0, 1, 1], [], []>} : vector<8x32xf32>, vector<32x32xf32>, vector<8x32xf32> -> vector<8x32xf32>
    %c0_13 = arith.constant 0 : index
    %c0_14 = arith.constant 0 : index
    %32 = vector.load %arg8[%c0_13, %c0_14] : memref<1x32xf32, #tpu.memory_space<vmem>>, vector<1x32xf32>
    %33 = vector.shape_cast %32 : vector<1x32xf32> to vector<32xf32>
    %34 = vector.shape_cast %33 : vector<32xf32> to vector<1x32xf32>
    %35 = vector.broadcast %34 : vector<1x32xf32> to vector<8x32xf32>
    %36 = arith.addf %31, %35 : vector<8x32xf32>
    %c0_15 = arith.constant 0 : index
    %c0_16 = arith.constant 0 : index
    %37 = vector.load %arg13[%c0_15, %c0_16] : memref<8x32xf32, #tpu.memory_space<vmem>>, vector<8x32xf32>
    tpu.vector_store %arg13[%c0_15, %c0_16], %36 {strides = array<i32>} : memref<8x32xf32, #tpu.memory_space<vmem>>, vector<8x32xf32>,
    %c0_17 = arith.constant 0 : index
    %c0_18 = arith.constant 0 : index
    %38 = vector.load %arg13[%c0_17, %c0_18] : memref<8x32xf32, #tpu.memory_space<vmem>>, vector<8x8xf32>
    %c0_19 = arith.constant 0 : index
    %c0_20 = arith.constant 0 : index
    %c0_21 = arith.constant 0 : index
    %39 = vector.load %arg3[%c0_19, %c0_20, %c0_21] : memref<1x16x32xf32, #tpu.memory_space<vmem>>, vector<1x16x8xf32>
    %40 = vector.shape_cast %39 : vector<1x16x8xf32> to vector<16x8xf32>
    %c0_22 = arith.constant 0 : index
    %c0_23 = arith.constant 0 : index
    %c0_24 = arith.constant 0 : index
    %41 = vector.load %arg4[%c0_22, %c0_23, %c0_24] : memref<1x16x32xf32, #tpu.memory_space<vmem>>, vector<1x16x8xf32>
    %42 = vector.shape_cast %41 : vector<1x16x8xf32> to vector<16x8xf32>
    %cst_25 = arith.constant dense<0.000000e+00> : vector<8x16xf32>
    %43 = tpu.matmul %38, %40, %cst_25 {dimension_numbers = #tpu.dot_dimension_numbers<[1], [1], [0], [0], [0, 0, 1, 0], [], []>} : vector<8x8xf32>, vector<16x8xf32>, vector<8x16xf32> -> vector<8x16xf32>
    %cst_26 = arith.constant dense<0xFF800000> : vector<8xf32>
    %44 = vector.multi_reduction <maximumf>, %43, %cst_26 [1] : vector<8x16xf32> to vector<8xf32>
    %45 = vector.shape_cast %44 : vector<8xf32> to vector<8x1xf32>
    %46 = vector.broadcast %45 : vector<8x1xf32> to vector<8x16xf32>
    %47 = arith.subf %43, %46 : vector<8x16xf32>
    %48 = math.exp %47 : vector<8x16xf32>
    %cst_27 = arith.constant dense<0.000000e+00> : vector<8xf32>
    %49 = vector.multi_reduction <add>, %48, %cst_27 [1] : vector<8x16xf32> to vector<8xf32>
    %50 = vector.shape_cast %49 : vector<8xf32> to vector<8x1xf32>
    %51 = tpu.reciprocal %50 {approx = true} : vector<8x1xf32> -> vector<8x1xf32>
    %52 = vector.broadcast %51 : vector<8x1xf32> to vector<8x16xf32>
    %53 = arith.mulf %48, %52 : vector<8x16xf32>
    %cst_28 = arith.constant dense<0.000000e+00> : vector<8x8xf32>
    %54 = tpu.matmul %53, %42, %cst_28 {dimension_numbers = #tpu.dot_dimension_numbers<[1], [0], [0], [1], [0, 0, 1, 1], [], []>} : vector<8x16xf32>, vector<16x8xf32>, vector<8x8xf32> -> vector<8x8xf32>
    %c0_29 = arith.constant 0 : index
    %c0_30 = arith.constant 0 : index
    %55 = vector.load %arg14[%c0_29, %c0_30] : memref<8x32xf32, #tpu.memory_space<vmem>>, vector<8x8xf32>
    tpu.vector_store %arg14[%c0_29, %c0_30], %54 {strides = array<i32>} : memref<8x32xf32, #tpu.memory_space<vmem>>, vector<8x8xf32>,
    %c0_31 = arith.constant 0 : index
    %c8 = arith.constant 8 : index
    %56 = vector.load %arg13[%c0_31, %c8] : memref<8x32xf32, #tpu.memory_space<vmem>>, vector<8x8xf32>
    %c0_32 = arith.constant 0 : index
    %c0_33 = arith.constant 0 : index
    %c8_34 = arith.constant 8 : index
    %57 = vector.load %arg3[%c0_32, %c0_33, %c8_34] : memref<1x16x32xf32, #tpu.memory_space<vmem>>, vector<1x16x8xf32>
    %58 = vector.shape_cast %57 : vector<1x16x8xf32> to vector<16x8xf32>
    %c0_35 = arith.constant 0 : index
    %c0_36 = arith.constant 0 : index
    %c8_37 = arith.constant 8 : index
    %59 = vector.load %arg4[%c0_35, %c0_36, %c8_37] : memref<1x16x32xf32, #tpu.memory_space<vmem>>, vector<1x16x8xf32>
    %60 = vector.shape_cast %59 : vector<1x16x8xf32> to vector<16x8xf32>
    %cst_38 = arith.constant dense<0.000000e+00> : vector<8x16xf32>
    %61 = tpu.matmul %56, %58, %cst_38 {dimension_numbers = #tpu.dot_dimension_numbers<[1], [1], [0], [0], [0, 0, 1, 0], [], []>} : vector<8x8xf32>, vector<16x8xf32>, vector<8x16xf32> -> vector<8x16xf32>
    %cst_39 = arith.constant dense<0xFF800000> : vector<8xf32>
    %62 = vector.multi_reduction <maximumf>, %61, %cst_39 [1] : vector<8x16xf32> to vector<8xf32>
    %63 = vector.shape_cast %62 : vector<8xf32> to vector<8x1xf32>
    %64 = vector.broadcast %63 : vector<8x1xf32> to vector<8x16xf32>
    %65 = arith.subf %61, %64 : vector<8x16xf32>
    %66 = math.exp %65 : vector<8x16xf32>
    %cst_40 = arith.constant dense<0.000000e+00> : vector<8xf32>
    %67 = vector.multi_reduction <add>, %66, %cst_40 [1] : vector<8x16xf32> to vector<8xf32>
    %68 = vector.shape_cast %67 : vector<8xf32> to vector<8x1xf32>
    %69 = tpu.reciprocal %68 {approx = true} : vector<8x1xf32> -> vector<8x1xf32>
    %70 = vector.broadcast %69 : vector<8x1xf32> to vector<8x16xf32>
    %71 = arith.mulf %66, %70 : vector<8x16xf32>
    %cst_41 = arith.constant dense<0.000000e+00> : vector<8x8xf32>
    %72 = tpu.matmul %71, %60, %cst_41 {dimension_numbers = #tpu.dot_dimension_numbers<[1], [0], [0], [1], [0, 0, 1, 1], [], []>} : vector<8x16xf32>, vector<16x8xf32>, vector<8x8xf32> -> vector<8x8xf32>
    %c0_42 = arith.constant 0 : index
    %c8_43 = arith.constant 8 : index
    %73 = vector.load %arg14[%c0_42, %c8_43] : memref<8x32xf32, #tpu.memory_space<vmem>>, vector<8x8xf32>
    tpu.vector_store %arg14[%c0_42, %c8_43], %72 {strides = array<i32>} : memref<8x32xf32, #tpu.memory_space<vmem>>, vector<8x8xf32>,
    %c0_44 = arith.constant 0 : index
    %c16 = arith.constant 16 : index
    %74 = vector.load %arg13[%c0_44, %c16] : memref<8x32xf32, #tpu.memory_space<vmem>>, vector<8x8xf32>
    %c0_45 = arith.constant 0 : index
    %c0_46 = arith.constant 0 : index
    %c16_47 = arith.constant 16 : index
    %75 = vector.load %arg3[%c0_45, %c0_46, %c16_47] : memref<1x16x32xf32, #tpu.memory_space<vmem>>, vector<1x16x8xf32>
    %76 = vector.shape_cast %75 : vector<1x16x8xf32> to vector<16x8xf32>
    %c0_48 = arith.constant 0 : index
    %c0_49 = arith.constant 0 : index
    %c16_50 = arith.constant 16 : index
    %77 = vector.load %arg4[%c0_48, %c0_49, %c16_50] : memref<1x16x32xf32, #tpu.memory_space<vmem>>, vector<1x16x8xf32>
    %78 = vector.shape_cast %77 : vector<1x16x8xf32> to vector<16x8xf32>
    %cst_51 = arith.constant dense<0.000000e+00> : vector<8x16xf32>
    %79 = tpu.matmul %74, %76, %cst_51 {dimension_numbers = #tpu.dot_dimension_numbers<[1], [1], [0], [0], [0, 0, 1, 0], [], []>} : vector<8x8xf32>, vector<16x8xf32>, vector<8x16xf32> -> vector<8x16xf32>
    %cst_52 = arith.constant dense<0xFF800000> : vector<8xf32>
    %80 = vector.multi_reduction <maximumf>, %79, %cst_52 [1] : vector<8x16xf32> to vector<8xf32>
    %81 = vector.shape_cast %80 : vector<8xf32> to vector<8x1xf32>
    %82 = vector.broadcast %81 : vector<8x1xf32> to vector<8x16xf32>
    %83 = arith.subf %79, %82 : vector<8x16xf32>
    %84 = math.exp %83 : vector<8x16xf32>
    %cst_53 = arith.constant dense<0.000000e+00> : vector<8xf32>
    %85 = vector.multi_reduction <add>, %84, %cst_53 [1] : vector<8x16xf32> to vector<8xf32>
    %86 = vector.shape_cast %85 : vector<8xf32> to vector<8x1xf32>
    %87 = tpu.reciprocal %86 {approx = true} : vector<8x1xf32> -> vector<8x1xf32>
    %88 = vector.broadcast %87 : vector<8x1xf32> to vector<8x16xf32>
    %89 = arith.mulf %84, %88 : vector<8x16xf32>
    %cst_54 = arith.constant dense<0.000000e+00> : vector<8x8xf32>
    %90 = tpu.matmul %89, %78, %cst_54 {dimension_numbers = #tpu.dot_dimension_numbers<[1], [0], [0], [1], [0, 0, 1, 1], [], []>} : vector<8x16xf32>, vector<16x8xf32>, vector<8x8xf32> -> vector<8x8xf32>
    %c0_55 = arith.constant 0 : index
    %c16_56 = arith.constant 16 : index
    %91 = vector.load %arg14[%c0_55, %c16_56] : memref<8x32xf32, #tpu.memory_space<vmem>>, vector<8x8xf32>
    tpu.vector_store %arg14[%c0_55, %c16_56], %90 {strides = array<i32>} : memref<8x32xf32, #tpu.memory_space<vmem>>, vector<8x8xf32>,
    %c0_57 = arith.constant 0 : index
    %c24 = arith.constant 24 : index
    %92 = vector.load %arg13[%c0_57, %c24] : memref<8x32xf32, #tpu.memory_space<vmem>>, vector<8x8xf32>
    %c0_58 = arith.constant 0 : index
    %c0_59 = arith.constant 0 : index
    %c24_60 = arith.constant 24 : index
    %93 = vector.load %arg3[%c0_58, %c0_59, %c24_60] : memref<1x16x32xf32, #tpu.memory_space<vmem>>, vector<1x16x8xf32>
    %94 = vector.shape_cast %93 : vector<1x16x8xf32> to vector<16x8xf32>
    %c0_61 = arith.constant 0 : index
    %c0_62 = arith.constant 0 : index
    %c24_63 = arith.constant 24 : index
    %95 = vector.load %arg4[%c0_61, %c0_62, %c24_63] : memref<1x16x32xf32, #tpu.memory_space<vmem>>, vector<1x16x8xf32>
    %96 = vector.shape_cast %95 : vector<1x16x8xf32> to vector<16x8xf32>
    %cst_64 = arith.constant dense<0.000000e+00> : vector<8x16xf32>
    %97 = tpu.matmul %92, %94, %cst_64 {dimension_numbers = #tpu.dot_dimension_numbers<[1], [1], [0], [0], [0, 0, 1, 0], [], []>} : vector<8x8xf32>, vector<16x8xf32>, vector<8x16xf32> -> vector<8x16xf32>
    %cst_65 = arith.constant dense<0xFF800000> : vector<8xf32>
    %98 = vector.multi_reduction <maximumf>, %97, %cst_65 [1] : vector<8x16xf32> to vector<8xf32>
    %99 = vector.shape_cast %98 : vector<8xf32> to vector<8x1xf32>
    %100 = vector.broadcast %99 : vector<8x1xf32> to vector<8x16xf32>
    %101 = arith.subf %97, %100 : vector<8x16xf32>
    %102 = math.exp %101 : vector<8x16xf32>
    %cst_66 = arith.constant dense<0.000000e+00> : vector<8xf32>
    %103 = vector.multi_reduction <add>, %102, %cst_66 [1] : vector<8x16xf32> to vector<8xf32>
    %104 = vector.shape_cast %103 : vector<8xf32> to vector<8x1xf32>
    %105 = tpu.reciprocal %104 {approx = true} : vector<8x1xf32> -> vector<8x1xf32>
    %106 = vector.broadcast %105 : vector<8x1xf32> to vector<8x16xf32>
    %107 = arith.mulf %102, %106 : vector<8x16xf32>
    %cst_67 = arith.constant dense<0.000000e+00> : vector<8x8xf32>
    %108 = tpu.matmul %107, %96, %cst_67 {dimension_numbers = #tpu.dot_dimension_numbers<[1], [0], [0], [1], [0, 0, 1, 1], [], []>} : vector<8x16xf32>, vector<16x8xf32>, vector<8x8xf32> -> vector<8x8xf32>
    %c0_68 = arith.constant 0 : index
    %c24_69 = arith.constant 24 : index
    %109 = vector.load %arg14[%c0_68, %c24_69] : memref<8x32xf32, #tpu.memory_space<vmem>>, vector<8x8xf32>
    tpu.vector_store %arg14[%c0_68, %c24_69], %108 {strides = array<i32>} : memref<8x32xf32, #tpu.memory_space<vmem>>, vector<8x8xf32>,
    %c0_70 = arith.constant 0 : index
    %c0_71 = arith.constant 0 : index
    %110 = vector.load %arg14[%c0_70, %c0_71] : memref<8x32xf32, #tpu.memory_space<vmem>>, vector<8x32xf32>
    %c0_72 = arith.constant 0 : index
    %c0_73 = arith.constant 0 : index
    %111 = vector.load %arg9[%c0_72, %c0_73] : memref<32x32xf32, #tpu.memory_space<vmem>>, vector<32x32xf32>
    %cst_74 = arith.constant dense<0.000000e+00> : vector<8x32xf32>
    %112 = tpu.matmul %110, %111, %cst_74 {dimension_numbers = #tpu.dot_dimension_numbers<[1], [0], [0], [1], [0, 0, 1, 1], [], []>} : vector<8x32xf32>, vector<32x32xf32>, vector<8x32xf32> -> vector<8x32xf32>
    %c0_75 = arith.constant 0 : index
    %c0_76 = arith.constant 0 : index
    %113 = vector.load %arg10[%c0_75, %c0_76] : memref<1x32xf32, #tpu.memory_space<vmem>>, vector<1x32xf32>
    %114 = vector.shape_cast %113 : vector<1x32xf32> to vector<32xf32>
    %115 = vector.shape_cast %114 : vector<32xf32> to vector<1x32xf32>
    %116 = vector.broadcast %115 : vector<1x32xf32> to vector<8x32xf32>
    %117 = arith.addf %112, %116 : vector<8x32xf32>
    %c0_77 = arith.constant 0 : index
    %c0_78 = arith.constant 0 : index
    %118 = memref.load %arg11[%c0_77, %c0_78] : memref<1x1xf32, #tpu.memory_space<smem>>
    %119 = vector.broadcast %118 : f32 to vector<8x32xf32>
    %120 = arith.mulf %117, %119 : vector<8x32xf32>
    %c0_79 = arith.constant 0 : index
    %c0_80 = arith.constant 0 : index
    %c0_81 = arith.constant 0 : index
    %121 = vector.load %arg12[%c0_79, %c0_80, %c0_81] : memref<1x8x32xf32, #tpu.memory_space<vmem>>, vector<1x8x32xf32>
    %122 = vector.shape_cast %121 : vector<1x8x32xf32> to vector<8x32xf32>
    %123 = vector.shape_cast %120 : vector<8x32xf32> to vector<1x8x32xf32>
    tpu.vector_store %arg12[%c0_79, %c0_80, %c0_81], %123 {strides = array<i32>} : memref<1x8x32xf32, #tpu.memory_space<vmem>>, vector<1x8x32xf32>,
    return
  }
  func.func @transform_0(%arg0: i32, %arg1: i32) -> (i32, i32, i32) {
    %c0_i32 = arith.constant 0 : i32
    %c0_i32_0 = arith.constant 0 : i32
    return %arg0, %arg1, %c0_i32 : i32, i32, i32
  }
  func.func @transform_1(%arg0: i32, %arg1: i32) -> (i32, i32, i32) {
    %c0_i32 = arith.constant 0 : i32
    %c0_i32_0 = arith.constant 0 : i32
    %c0_i32_1 = arith.constant 0 : i32
    return %arg0, %c0_i32, %c0_i32_0 : i32, i32, i32
  }
  func.func @transform_2(%arg0: i32, %arg1: i32) -> (i32, i32, i32) {
    %c0_i32 = arith.constant 0 : i32
    %c0_i32_0 = arith.constant 0 : i32
    %c0_i32_1 = arith.constant 0 : i32
    return %arg0, %c0_i32, %c0_i32_0 : i32, i32, i32
  }
  func.func @transform_3(%arg0: i32, %arg1: i32) -> (i32, i32) {
    %c0_i32 = arith.constant 0 : i32
    %c0_i32_0 = arith.constant 0 : i32
    %c0_i32_1 = arith.constant 0 : i32
    return %c0_i32, %c0_i32_0 : i32, i32
  }
  func.func @transform_4(%arg0: i32, %arg1: i32) -> (i32, i32) {
    %c0_i32 = arith.constant 0 : i32
    %c0_i32_0 = arith.constant 0 : i32
    %c0_i32_1 = arith.constant 0 : i32
    return %c0_i32, %c0_i32_0 : i32, i32
  }
  func.func @transform_5(%arg0: i32, %arg1: i32) -> (i32, i32) {
    %c0_i32 = arith.constant 0 : i32
    %c0_i32_0 = arith.constant 0 : i32
    %c0_i32_1 = arith.constant 0 : i32
    return %c0_i32, %c0_i32_0 : i32, i32
  }
  func.func @transform_6(%arg0: i32, %arg1: i32) -> (i32, i32) {
    %c0_i32 = arith.constant 0 : i32
    %c0_i32_0 = arith.constant 0 : i32
    %c0_i32_1 = arith.constant 0 : i32
    return %c0_i32, %c0_i32_0 : i32, i32
  }
  func.func @transform_7(%arg0: i32, %arg1: i32) -> (i32, i32) {
    %c0_i32 = arith.constant 0 : i32
    %c0_i32_0 = arith.constant 0 : i32
    %c0_i32_1 = arith.constant 0 : i32
    return %c0_i32, %c0_i32_0 : i32, i32
  }
  func.func @transform_8(%arg0: i32, %arg1: i32) -> (i32, i32) {
    %c0_i32 = arith.constant 0 : i32
    %c0_i32_0 = arith.constant 0 : i32
    %c0_i32_1 = arith.constant 0 : i32
    return %c0_i32, %c0_i32_0 : i32, i32
  }
  func.func @transform_9(%arg0: i32, %arg1: i32) -> (i32, i32) {
    %c0_i32 = arith.constant 0 : i32
    %c0_i32_0 = arith.constant 0 : i32
    %c0_i32_1 = arith.constant 0 : i32
    return %c0_i32, %c0_i32_0 : i32, i32
  }
  func.func @transform_10(%arg0: i32, %arg1: i32) -> (i32, i32, i32) {
    %c0_i32 = arith.constant 0 : i32
    %c0_i32_0 = arith.constant 0 : i32
    return %arg0, %arg1, %c0_i32 : i32, i32, i32
  }
}

</mosaic_0001>

<llo_original>
// kernel: tpu_custom_call.1
$region0: #{tpu_custom_call.1}
  #allocation0 [shape = 'u32[]', space=smem, size = 0x4, offset = 0x4, fixed_abs, tag = 'smem constant byte address 0x4 - core index']
  #allocation1 [shape = 'u32[144,128]{1,0:T(1,128)}', space=vmem, size = 0x12000, scoped, tag = 'internal scratch']
  #allocation2 [shape = 'f32[8,32]{1,0:T(8,128)}', space=vmem, size = 0x1000, scoped, tag = 'scratch operand']
  #allocation3 [shape = 'f32[8,32]{1,0:T(8,128)}', space=vmem, size = 0x1000, scoped, tag = 'scratch operand']
  #allocation4 [shape = 'f32[1,1]{1,0:T(1,128)S(6)}', space=smem, size = 0x200, scoped, tag = 'scoped memory for tpu_custom_call.1']
  %s0 = inlined_call_operand.hbm [shape: f32[2,8,32], index: 0, kind: input, shape index: {}]
  %s1 = inlined_call_operand.hbm [shape: f32[2,16,32], index: 1, kind: input, shape index: {}]
  %s2 = inlined_call_operand.hbm [shape: f32[2,16,32], index: 2, kind: input, shape index: {}]
  %s3 = inlined_call_operand.vmem [shape: f32[1,32], index: 3, kind: input, shape index: {}]
  %s4 = inlined_call_operand.vmem [shape: f32[1,32], index: 4, kind: input, shape index: {}]
  %s5 = inlined_call_operand.hbm [shape: f32[32,32], index: 5, kind: input, shape index: {}]
  %s6 = inlined_call_operand.vmem [shape: f32[1,32], index: 6, kind: input, shape index: {}]
  %s7 = inlined_call_operand.hbm [shape: f32[32,32], index: 7, kind: input, shape index: {}]
  %s8 = inlined_call_operand.vmem [shape: f32[1,32], index: 8, kind: input, shape index: {}]
  %s9 = inlined_call_operand.<no memory space> [shape: f32[1,1], index: 9, kind: input, shape index: {}]
  %s10 = inlined_call_operand.hbm [shape: f32[2,8,32], index: 10, kind: output, shape index: {}]
  %s11 = sld [smem:[#allocation0]]
  $region93: #{tpu_custom_call.1} parent=0
    _
  %s13 = ssub.s32 1, %s11
  %s14 = scalar_select 0, %s13, %s11
  %15 = sst [smem:[#allocation4]] %s9
  $region1: #{tpu_custom_call.1} parent=0
    #allocation5 [shape = 'u8[8192]{0}', space=vmem, size = 0x2000, scoped, tag = 'input window, operand 0']
    #allocation6 [shape = 's32[2]{0}', space=sflag, size = 0x8, scoped, tag = 'scoped memory for tpu_custom_call.1']
    #allocation7 [shape = 's32[2]{0}', space=sflag, size = 0x8, scoped, tag = 'scoped memory for tpu_custom_call.1']
    #allocation8 [shape = 'u8[16384]{0}', space=vmem, size = 0x4000, scoped, tag = 'input window, operand 1']
    #allocation9 [shape = 's32[2]{0}', space=sflag, size = 0x8, scoped, tag = 'scoped memory for tpu_custom_call.1']
    #allocation10 [shape = 'u8[16384]{0}', space=vmem, size = 0x4000, scoped, tag = 'input window, operand 2']
    #allocation11 [shape = 'u8[16384]{0}', space=vmem, size = 0x4000, scoped, tag = 'input window, operand 5, single buffered']
    #allocation12 [shape = 's32[1]{0}', space=sflag, size = 0x4, scoped, tag = 'scoped memory for tpu_custom_call.1']
    #allocation13 [shape = 'u8[16384]{0}', space=vmem, size = 0x4000, scoped, tag = 'input window, operand 7, single buffered']
    #allocation14 [shape = 'u8[8192]{0}', space=vmem, size = 0x2000, scoped, tag = 'output window, operand 0']
    %16 = vsyncpa [#allocation6], 0
    %s17 = scalar_lea.sflag [#allocation6], 1
    %18 = vsyncpa %s17, 0
    %19 = vsyncpa [#allocation9], 0
    %s20 = scalar_lea.sflag [#allocation9], 1
    %21 = vsyncpa %s20, 0
    %22 = vsyncpa [#allocation12], 0
    %23 = vsyncpa [#allocation7], 0
    %s24 = scalar_lea.sflag [#allocation7], 1
    %25 = vsyncpa %s24, 0
    loop: start=0, step=1, limit=4
    $region2: #{tpu_custom_call.1} parent=1 // loop_pre_header
      _
    $region3: #{tpu_custom_call.1} parent=1 // loop_header
      %s27 = sphi 0, %s31
      %p28 = scmp.ge.s32.totalorder %s27, 4
      %s34 = sphi 0, %s46
      %s35 = sphi 0, %s42
      %s36 = sphi 0, %s34
      %s37 = sphi 0, %s35
      %s38 = sphi 0, %s36
      %s39 = sphi 0, %s37
      %s51 = sphi 0, %s53
      %s54 = sphi 0, %s51
      %s55 = sphi 0, %s54
      %s71 = sphi 0, %s55
      %s77 = sphi 0, %s79
      %s80 = sphi 0, %s77
      %s81 = sphi 0, %s80
      %s97 = sphi 0, %s81
      %s103 = sphi 0, %s105
      %s106 = sphi 0, %s103
      %s107 = sphi 0, %s106
      %s123 = sphi 0, %s107
      %s127 = sphi 0, %s127
      %s129 = sphi 0, %s127
      %s130 = sphi 0, %s129
      %s144 = sphi 0, %s130
      %s148 = sphi 0, %s148
      %s150 = sphi 0, %s148
      %s151 = sphi 0, %s150
      %s165 = sphi 0, %s151
      %s169 = sphi 0, %s169
      %s171 = sphi 0, %s169
      %s172 = sphi 0, %s171
      %s186 = sphi 0, %s172
      %s190 = sphi 0, %s190
      %s192 = sphi 0, %s190
      %s193 = sphi 0, %s192
      %s207 = sphi 0, %s193
      %s211 = sphi 0, %s211
      %s213 = sphi 0, %s211
      %s214 = sphi 0, %s213
      %s228 = sphi 0, %s214
      %s232 = sphi 0, %s232
      %s234 = sphi 0, %s232
      %s235 = sphi 0, %s234
      %s249 = sphi 0, %s235
      %s253 = sphi 0, %s253
      %s255 = sphi 0, %s253
      %s256 = sphi 0, %s255
      %s270 = sphi 0, %s256
      %s278 = sphi 0, %s280
      %s281 = sphi 0, %s278
      %s282 = sphi 0, %s281
      %s298 = sphi 0, %s282
    $region4: #{tpu_custom_call.1} parent=1 // loop_header_branch
      %30 = sbr.rel (%p28) target = $region8
    $region5: #{tpu_custom_call.1} parent=1 // loop_body
      %s32 = ssub.s32 %s27, 1
      %s33 = ssub.s32 %s27, 2
      %s40 = sadd.s32 1, %s35
      %p41 = scmp.ge.s32.totalorder %s40, 1
      %s42 = scalar_select %p41, 0, %s40
      %s43 = sadd.s32 1, %s34
      %s44 = scalar_select %p41, %s43, %s34
      %p45 = scmp.ge.s32.totalorder %s44, 2
      %s46 = scalar_select %p45, 0, %s44
      %s47 = ssub.s32 %s34, %s46
      %s48 = ssub.s32 %s35, %s42
      %s49 = sor.u32 %s47, %s48
      %p50 = scmp.eq.s32.totalorder %s49, 0
      %s52 = sadd.s32 %s51, 1
      %s53 = scalar_select %p50, %s51, %s52
      %p56 = pneg %p50
      %p57 = scmp.eq.s32.totalorder %s27, 1
      %p58 = por %p56, %p57
      %p59 = scmp.ne.s32.totalorder %s51, %s54
      %p60 = scmp.eq.s32.totalorder %s27, 0
      %p61 = por %p59, %p60
      %p62 = scmp.ne.s32.totalorder %s51, %s54
      %p63 = scmp.eq.s32.totalorder %s32, 1
      %p64 = por %p62, %p63
      %p65 = scmp.ne.s32.totalorder %s54, %s55
      %p66 = scmp.eq.s32.totalorder %s32, 0
      %p67 = por %p65, %p66
      %p68 = scmp.ne.s32.totalorder %s54, %s55
      %p69 = scmp.eq.s32.totalorder %s33, 1
      %p70 = por %p68, %p69
      %p72 = scmp.ne.s32.totalorder %s55, %s71
      %p73 = scmp.eq.s32.totalorder %s33, 0
      %p74 = por %p72, %p73
      %s75 = ssub.s32 %s34, %s46
      %p76 = scmp.eq.s32.totalorder %s75, 0
      %s78 = sadd.s32 %s77, 1
      %s79 = scalar_select %p76, %s77, %s78
      %p82 = pneg %p76
      %p83 = scmp.eq.s32.totalorder %s27, 1
      %p84 = por %p82, %p83
      %p85 = scmp.ne.s32.totalorder %s77, %s80
      %p86 = scmp.eq.s32.totalorder %s27, 0
      %p87 = por %p85, %p86
      %p88 = scmp.ne.s32.totalorder %s77, %s80
      %p89 = scmp.eq.s32.totalorder %s32, 1
      %p90 = por %p88, %p89
      %p91 = scmp.ne.s32.totalorder %s80, %s81
      %p92 = scmp.eq.s32.totalorder %s32, 0
      %p93 = por %p91, %p92
      %p94 = scmp.ne.s32.totalorder %s80, %s81
      %p95 = scmp.eq.s32.totalorder %s33, 1
      %p96 = por %p94, %p95
      %p98 = scmp.ne.s32.totalorder %s81, %s97
      %p99 = scmp.eq.s32.totalorder %s33, 0
      %p100 = por %p98, %p99
      %s101 = ssub.s32 %s34, %s46
      %p102 = scmp.eq.s32.totalorder %s101, 0
      %s104 = sadd.s32 %s103, 1
      %s105 = scalar_select %p102, %s103, %s104
      %p108 = pneg %p102
      %p109 = scmp.eq.s32.totalorder %s27, 1
      %p110 = por %p108, %p109
      %p111 = scmp.ne.s32.totalorder %s103, %s106
      %p112 = scmp.eq.s32.totalorder %s27, 0
      %p113 = por %p111, %p112
      %p114 = scmp.ne.s32.totalorder %s103, %s106
      %p115 = scmp.eq.s32.totalorder %s32, 1
      %p116 = por %p114, %p115
      %p117 = scmp.ne.s32.totalorder %s106, %s107
      %p118 = scmp.eq.s32.totalorder %s32, 0
      %p119 = por %p117, %p118
      %p120 = scmp.ne.s32.totalorder %s106, %s107
      %p121 = scmp.eq.s32.totalorder %s33, 1
      %p122 = por %p120, %p121
      %p124 = scmp.ne.s32.totalorder %s107, %s123
      %p125 = scmp.eq.s32.totalorder %s33, 0
      %p126 = por %p124, %p125
      %s128 = sadd.s32 %s127, 1
      %p131 = scmp.eq.s32.totalorder %s27, 1
      %p132 = scmp.ne.s32.totalorder %s127, %s129
      %p133 = scmp.eq.s32.totalorder %s27, 0
      %p134 = por %p132, %p133
      %p135 = scmp.ne.s32.totalorder %s127, %s129
      %p136 = scmp.eq.s32.totalorder %s32, 1
      %p137 = por %p135, %p136
      %p138 = scmp.ne.s32.totalorder %s129, %s130
      %p139 = scmp.eq.s32.totalorder %s32, 0
      %p140 = por %p138, %p139
      %p141 = scmp.ne.s32.totalorder %s129, %s130
      %p142 = scmp.eq.s32.totalorder %s33, 1
      %p143 = por %p141, %p142
      %p145 = scmp.ne.s32.totalorder %s130, %s144
      %p146 = scmp.eq.s32.totalorder %s33, 0
      %p147 = por %p145, %p146
      %s149 = sadd.s32 %s148, 1
      %p152 = scmp.eq.s32.totalorder %s27, 1
      %p153 = scmp.ne.s32.totalorder %s148, %s150
      %p154 = scmp.eq.s32.totalorder %s27, 0
      %p155 = por %p153, %p154
      %p156 = scmp.ne.s32.totalorder %s148, %s150
      %p157 = scmp.eq.s32.totalorder %s32, 1
      %p158 = por %p156, %p157
      %p159 = scmp.ne.s32.totalorder %s150, %s151
      %p160 = scmp.eq.s32.totalorder %s32, 0
      %p161 = por %p159, %p160
      %p162 = scmp.ne.s32.totalorder %s150, %s151
      %p163 = scmp.eq.s32.totalorder %s33, 1
      %p164 = por %p162, %p163
      %p166 = scmp.ne.s32.totalorder %s151, %s165
      %p167 = scmp.eq.s32.totalorder %s33, 0
      %p168 = por %p166, %p167
      %s170 = sadd.s32 %s169, 1
      %p173 = scmp.eq.s32.totalorder %s27, 1
      %p174 = scmp.ne.s32.totalorder %s169, %s171
      %p175 = scmp.eq.s32.totalorder %s27, 0
      %p176 = por %p174, %p175
      %p177 = scmp.ne.s32.totalorder %s169, %s171
      %p178 = scmp.eq.s32.totalorder %s32, 1
      %p179 = por %p177, %p178
      %p180 = scmp.ne.s32.totalorder %s171, %s172
      %p181 = scmp.eq.s32.totalorder %s32, 0
      %p182 = por %p180, %p181
      %p183 = scmp.ne.s32.totalorder %s171, %s172
      %p184 = scmp.eq.s32.totalorder %s33, 1
      %p185 = por %p183, %p184
      %p187 = scmp.ne.s32.totalorder %s172, %s186
      %p188 = scmp.eq.s32.totalorder %s33, 0
      %p189 = por %p187, %p188
      %s191 = sadd.s32 %s190, 1
      %p194 = scmp.eq.s32.totalorder %s27, 1
      %p195 = scmp.ne.s32.totalorder %s190, %s192
      %p196 = scmp.eq.s32.totalorder %s27, 0
      %p197 = por %p195, %p196
      %p198 = scmp.ne.s32.totalorder %s190, %s192
      %p199 = scmp.eq.s32.totalorder %s32, 1
      %p200 = por %p198, %p199
      %p201 = scmp.ne.s32.totalorder %s192, %s193
      %p202 = scmp.eq.s32.totalorder %s32, 0
      %p203 = por %p201, %p202
      %p204 = scmp.ne.s32.totalorder %s192, %s193
      %p205 = scmp.eq.s32.totalorder %s33, 1
      %p206 = por %p204, %p205
      %p208 = scmp.ne.s32.totalorder %s193, %s207
      %p209 = scmp.eq.s32.totalorder %s33, 0
      %p210 = por %p208, %p209
      %s212 = sadd.s32 %s211, 1
      %p215 = scmp.eq.s32.totalorder %s27, 1
      %p216 = scmp.ne.s32.totalorder %s211, %s213
      %p217 = scmp.eq.s32.totalorder %s27, 0
      %p218 = por %p216, %p217
      %p219 = scmp.ne.s32.totalorder %s211, %s213
      %p220 = scmp.eq.s32.totalorder %s32, 1
      %p221 = por %p219, %p220
      %p222 = scmp.ne.s32.totalorder %s213, %s214
      %p223 = scmp.eq.s32.totalorder %s32, 0
      %p224 = por %p222, %p223
      %p225 = scmp.ne.s32.totalorder %s213, %s214
      %p226 = scmp.eq.s32.totalorder %s33, 1
      %p227 = por %p225, %p226
      %p229 = scmp.ne.s32.totalorder %s214, %s228
      %p230 = scmp.eq.s32.totalorder %s33, 0
      %p231 = por %p229, %p230
      %s233 = sadd.s32 %s232, 1
      %p236 = scmp.eq.s32.totalorder %s27, 1
      %p237 = scmp.ne.s32.totalorder %s232, %s234
      %p238 = scmp.eq.s32.totalorder %s27, 0
      %p239 = por %p237, %p238
      %p240 = scmp.ne.s32.totalorder %s232, %s234
      %p241 = scmp.eq.s32.totalorder %s32, 1
      %p242 = por %p240, %p241
      %p243 = scmp.ne.s32.totalorder %s234, %s235
      %p244 = scmp.eq.s32.totalorder %s32, 0
      %p245 = por %p243, %p244
      %p246 = scmp.ne.s32.totalorder %s234, %s235
      %p247 = scmp.eq.s32.totalorder %s33, 1
      %p248 = por %p246, %p247
      %p250 = scmp.ne.s32.totalorder %s235, %s249
      %p251 = scmp.eq.s32.totalorder %s33, 0
      %p252 = por %p250, %p251
      %s254 = sadd.s32 %s253, 1
      %p257 = scmp.eq.s32.totalorder %s27, 1
      %p258 = scmp.ne.s32.totalorder %s253, %s255
      %p259 = scmp.eq.s32.totalorder %s27, 0
      %p260 = por %p258, %p259
      %p261 = scmp.ne.s32.totalorder %s253, %s255
      %p262 = scmp.eq.s32.totalorder %s32, 1
      %p263 = por %p261, %p262
      %p264 = scmp.ne.s32.totalorder %s255, %s256
      %p265 = scmp.eq.s32.totalorder %s32, 0
      %p266 = por %p264, %p265
      %p267 = scmp.ne.s32.totalorder %s255, %s256
      %p268 = scmp.eq.s32.totalorder %s33, 1
      %p269 = por %p267, %p268
      %p271 = scmp.ne.s32.totalorder %s256, %s270
      %p272 = scmp.eq.s32.totalorder %s33, 0
      %p273 = por %p271, %p272
      %s274 = ssub.s32 %s34, %s46
      %s275 = ssub.s32 %s35, %s42
      %s276 = sor.u32 %s274, %s275
      %p277 = scmp.eq.s32.totalorder %s276, 0
      %s279 = sadd.s32 %s278, 1
      %s280 = scalar_select %p277, %s278, %s279
      %p283 = pneg %p277
      %p284 = scmp.eq.s32.totalorder %s27, 1
      %p285 = por %p283, %p284
      %p286 = scmp.ne.s32.totalorder %s278, %s281
      %p287 = scmp.eq.s32.totalorder %s27, 0
      %p288 = por %p286, %p287
      %p289 = scmp.ne.s32.totalorder %s278, %s281
      %p290 = scmp.eq.s32.totalorder %s32, 1
      %p291 = por %p289, %p290
      %p292 = scmp.ne.s32.totalorder %s281, %s282
      %p293 = scmp.eq.s32.totalorder %s32, 0
      %p294 = por %p292, %p293
      %p295 = scmp.ne.s32.totalorder %s281, %s282
      %p296 = scmp.eq.s32.totalorder %s33, 1
      %p297 = por %p295, %p296
      %p299 = scmp.ne.s32.totalorder %s282, %s298
      %p300 = scmp.eq.s32.totalorder %s33, 0
      %p301 = por %p299, %p300
      %p302 = scmp.le.s32.totalorder 1, %s27
      %p303 = scmp.lt.s32.totalorder %s27, 3
      %p304 = pnand %p302, %p303
      %p305 = pneg %p304
      // Predicated region
      $region9: #{tpu_custom_call.1} parent=5 // pred_check
        _
      $region10: #{tpu_custom_call.1} parent=5 // pred_check_branch
        %307 = sbr.rel (%p304) target = $region12
      $region11: #{tpu_custom_call.1} parent=5 // pred_region
        %s308 = ssub.s32 %s27, 1
        // Predicated region
        $region13: #{tpu_custom_call.1} parent=11 // pred_check
          %p309 = pneg %p140
        $region14: #{tpu_custom_call.1} parent=11 // pred_check_branch
          %311 = sbr.rel (%p309) target = $region16
        $region15: #{tpu_custom_call.1} parent=11 // pred_region
          _
        $region16: #{tpu_custom_call.1} parent=11 // pred_fallthru
          _
        // Predicated region
        $region17: #{tpu_custom_call.1} parent=11 // pred_check
          %p312 = pneg %p161
        $region18: #{tpu_custom_call.1} parent=11 // pred_check_branch
          %314 = sbr.rel (%p312) target = $region20
        $region19: #{tpu_custom_call.1} parent=11 // pred_region
          _
        $region20: #{tpu_custom_call.1} parent=11 // pred_fallthru
          _
        // Predicated region
        $region21: #{tpu_custom_call.1} parent=11 // pred_check
          %p315 = pneg %p182
        $region22: #{tpu_custom_call.1} parent=11 // pred_check_branch
          %317 = sbr.rel (%p315) target = $region24
        $region23: #{tpu_custom_call.1} parent=11 // pred_region
          %s319 = ssub.s32 512, 512
          %320 = vsyncadd [#allocation12], %s319
          %s321 = sshll.u32 [#allocation11], 4
          %s322 = int_to_ptr.vmem [resolvable:$true] %s321
          %327 = dma.hbm_to_vmem [thread:$0]  %s5, 512, %s322, [#allocation12], 128, 128, 8
        $region24: #{tpu_custom_call.1} parent=11 // pred_fallthru
          _
        // Predicated region
        $region25: #{tpu_custom_call.1} parent=11 // pred_check
          %p328 = pneg %p203
        $region26: #{tpu_custom_call.1} parent=11 // pred_check_branch
          %330 = sbr.rel (%p328) target = $region28
        $region27: #{tpu_custom_call.1} parent=11 // pred_region
          _
        $region28: #{tpu_custom_call.1} parent=11 // pred_fallthru
          _
        // Predicated region
        $region29: #{tpu_custom_call.1} parent=11 // pred_check
          %p331 = pneg %p224
        $region30: #{tpu_custom_call.1} parent=11 // pred_check_branch
          %333 = sbr.rel (%p331) target = $region32
        $region31: #{tpu_custom_call.1} parent=11 // pred_region
          %s335 = ssub.s32 512, 512
          %336 = vsyncadd [#allocation12], %s335
          %s337 = sshll.u32 [#allocation13], 4
          %s338 = int_to_ptr.vmem [resolvable:$true] %s337
          %343 = dma.hbm_to_vmem [thread:$0]  %s7, 512, %s338, [#allocation12], 128, 128, 8
        $region32: #{tpu_custom_call.1} parent=11 // pred_fallthru
          _
        // Predicated region
        $region33: #{tpu_custom_call.1} parent=11 // pred_check
          %p344 = pneg %p245
        $region34: #{tpu_custom_call.1} parent=11 // pred_check_branch
          %346 = sbr.rel (%p344) target = $region36
        $region35: #{tpu_custom_call.1} parent=11 // pred_region
          _
        $region36: #{tpu_custom_call.1} parent=11 // pred_fallthru
          _
        // Predicated region
        $region37: #{tpu_custom_call.1} parent=11 // pred_check
          %p347 = pneg %p266
        $region38: #{tpu_custom_call.1} parent=11 // pred_check_branch
          %349 = sbr.rel (%p347) target = $region40
        $region39: #{tpu_custom_call.1} parent=11 // pred_region
          _
        $region40: #{tpu_custom_call.1} parent=11 // pred_fallthru
          _
      $region12: #{tpu_custom_call.1} parent=5 // pred_fallthru
        _
      %p350 = scmp.lt.s32.totalorder %s27, 2
      // Predicated region
      $region41: #{tpu_custom_call.1} parent=5 // pred_check
        %p351 = pneg %p350
      $region42: #{tpu_custom_call.1} parent=5 // pred_check_branch
        %353 = sbr.rel (%p351) target = $region44
      $region43: #{tpu_custom_call.1} parent=5 // pred_region
        // Predicated region
        $region45: #{tpu_custom_call.1} parent=43 // pred_check
          %p354 = pneg %p61
        $region46: #{tpu_custom_call.1} parent=43 // pred_check_branch
          %356 = sbr.rel (%p354) target = $region48
        $region47: #{tpu_custom_call.1} parent=43 // pred_region
          %s357 = sand.u32 %s51, 1
          %s358 = scalar_lea.sflag [#allocation6], %s357
          %s359 = sand.u32 %s51, 1
          %s360 = smul.addr %s359, 8
          %s361 = scalar_lea.vmem [#allocation5], %s360
          %s363 = ssub.s32 128, 128
          %364 = vsyncadd %s358, %s363
          %s365 = sadd.s32 %s35, %s34
          %s366 = smul.addr %s365, 128
          %s367 = scalar_lea.hbm %s0, %s366
          %s369 = sshll.u32 %s361, 4
          %s370 = int_to_ptr.vmem [resolvable:$true] %s369
          %372 = dma.hbm_to_vmem [thread:$0]  %s367, 128, %s370, %s358
        $region48: #{tpu_custom_call.1} parent=43 // pred_fallthru
          _
        // Predicated region
        $region49: #{tpu_custom_call.1} parent=43 // pred_check
          %p373 = pneg %p87
        $region50: #{tpu_custom_call.1} parent=43 // pred_check_branch
          %375 = sbr.rel (%p373) target = $region52
        $region51: #{tpu_custom_call.1} parent=43 // pred_region
          %s376 = sand.u32 %s27, 1
          %s377 = scalar_lea.sflag [#allocation9], %s376
          %s378 = sand.u32 %s77, 1
          %s379 = smul.addr %s378, 16
          %s380 = scalar_lea.vmem [#allocation8], %s379
          %s382 = ssub.s32 256, 256
          %383 = vsyncadd %s377, %s382
          %s384 = smul.addr %s34, 2
          %s385 = smul.addr %s384, 128
          %s386 = scalar_lea.hbm %s1, %s385
          %s387 = sshll.u32 %s380, 4
          %s388 = int_to_ptr.vmem [resolvable:$true] %s387
          %393 = dma.hbm_to_vmem [thread:$0]  %s386, 256, %s388, %s377, 128, 128, 8
        $region52: #{tpu_custom_call.1} parent=43 // pred_fallthru
          _
        // Predicated region
        $region53: #{tpu_custom_call.1} parent=43 // pred_check
          %p394 = pneg %p113
        $region54: #{tpu_custom_call.1} parent=43 // pred_check_branch
          %396 = sbr.rel (%p394) target = $region56
        $region55: #{tpu_custom_call.1} parent=43 // pred_region
          %s397 = sand.u32 %s27, 1
          %s398 = scalar_lea.sflag [#allocation9], %s397
          %s399 = sand.u32 %s103, 1
          %s400 = smul.addr %s399, 16
          %s401 = scalar_lea.vmem [#allocation10], %s400
          %s403 = ssub.s32 256, 256
          %404 = vsyncadd %s398, %s403
          %s405 = smul.addr %s34, 2
          %s406 = smul.addr %s405, 128
          %s407 = scalar_lea.hbm %s2, %s406
          %s408 = sshll.u32 %s401, 4
          %s409 = int_to_ptr.vmem [resolvable:$true] %s408
          %414 = dma.hbm_to_vmem [thread:$0]  %s407, 256, %s409, %s398, 128, 128, 8
        $region56: #{tpu_custom_call.1} parent=43 // pred_fallthru
          _
      $region44: #{tpu_custom_call.1} parent=5 // pred_fallthru
        _
      %p415 = scmp.le.s32.totalorder 1, %s27
      %p416 = scmp.lt.s32.totalorder %s27, 3
      %p417 = pnand %p415, %p416
      %p418 = pneg %p417
      // Predicated region
      $region57: #{tpu_custom_call.1} parent=5 // pred_check
        _
      $region58: #{tpu_custom_call.1} parent=5 // pred_check_branch
        %420 = sbr.rel (%p417) target = $region60
      $region59: #{tpu_custom_call.1} parent=5 // pred_region
        %s421 = ssub.s32 %s27, 1
        %s422 = sand.u32 %s54, 1
        %s423 = scalar_lea.sflag [#allocation6], %s422
        %s424 = sand.u32 %s54, 1
        %s425 = smul.addr %s424, 8
        %s426 = scalar_lea.vmem [#allocation5], %s425
        // Predicated region
        $region61: #{tpu_custom_call.1} parent=59 // pred_check
          %p427 = pneg %p67
        $region62: #{tpu_custom_call.1} parent=59 // pred_check_branch
          %429 = sbr.rel (%p427) target = $region64
        $region63: #{tpu_custom_call.1} parent=59 // pred_region
          %430 = dma.done %s423, 128
        $region64: #{tpu_custom_call.1} parent=59 // pred_fallthru
          _
        %s431 = sand.u32 %s32, 1
        %s432 = scalar_lea.sflag [#allocation9], %s431
        %s433 = sand.u32 %s80, 1
        %s434 = smul.addr %s433, 16
        %s435 = scalar_lea.vmem [#allocation8], %s434
        // Predicated region
        $region65: #{tpu_custom_call.1} parent=59 // pred_check
          %p436 = pneg %p93
        $region66: #{tpu_custom_call.1} parent=59 // pred_check_branch
          %438 = sbr.rel (%p436) target = $region68
        $region67: #{tpu_custom_call.1} parent=59 // pred_region
          %439 = dma.done %s432, 256
        $region68: #{tpu_custom_call.1} parent=59 // pred_fallthru
          _
        %s440 = sand.u32 %s32, 1
        %s441 = scalar_lea.sflag [#allocation9], %s440
        %s442 = sand.u32 %s106, 1
        %s443 = smul.addr %s442, 16
        %s444 = scalar_lea.vmem [#allocation10], %s443
        // Predicated region
        $region69: #{tpu_custom_call.1} parent=59 // pred_check
          %p445 = pneg %p119
        $region70: #{tpu_custom_call.1} parent=59 // pred_check_branch
          %447 = sbr.rel (%p445) target = $region72
        $region71: #{tpu_custom_call.1} parent=59 // pred_region
          %448 = dma.done %s441, 256
        $region72: #{tpu_custom_call.1} parent=59 // pred_fallthru
          _
        // Predicated region
        $region73: #{tpu_custom_call.1} parent=59 // pred_check
          %p449 = pneg %p182
        $region74: #{tpu_custom_call.1} parent=59 // pred_check_branch
          %451 = sbr.rel (%p449) target = $region76
        $region75: #{tpu_custom_call.1} parent=59 // pred_region
          %452 = dma.done [#allocation12], 512
        $region76: #{tpu_custom_call.1} parent=59 // pred_fallthru
          _
        // Predicated region
        $region77: #{tpu_custom_call.1} parent=59 // pred_check
          %p453 = pneg %p224
        $region78: #{tpu_custom_call.1} parent=59 // pred_check_branch
          %455 = sbr.rel (%p453) target = $region80
        $region79: #{tpu_custom_call.1} parent=59 // pred_region
          %456 = dma.done [#allocation12], 512
        $region80: #{tpu_custom_call.1} parent=59 // pred_fallthru
          _
        %s457 = sand.u32 %s54, 1
        %s458 = scalar_lea.sflag [#allocation6], %s457
        %s459 = sand.u32 %s54, 1
        %s460 = smul.addr %s459, 8
        %s461 = scalar_lea.vmem [#allocation5], %s460
        %p462 = pneg %p67
        %p463 = pneg %p64
        %s464 = sand.u32 %s32, 1
        %s465 = scalar_lea.sflag [#allocation9], %s464
        %s466 = sand.u32 %s80, 1
        %s467 = smul.addr %s466, 16
        %s468 = scalar_lea.vmem [#allocation8], %s467
        %p469 = pneg %p93
        %p470 = pneg %p90
        %s471 = sand.u32 %s32, 1
        %s472 = scalar_lea.sflag [#allocation9], %s471
        %s473 = sand.u32 %s106, 1
        %s474 = smul.addr %s473, 16
        %s475 = scalar_lea.vmem [#allocation10], %s474
        %p476 = pneg %p119
        %p477 = pneg %p116
        %p478 = pneg %p140
        %p479 = pneg %p137
        %p480 = pneg %p161
        %p481 = pneg %p158
        %p482 = pneg %p182
        %p483 = pneg %p179
        %p484 = pneg %p203
        %p485 = pneg %p200
        %p486 = pneg %p224
        %p487 = pneg %p221
        %p488 = pneg %p245
        %p489 = pneg %p242
        %p490 = pneg %p266
        %p491 = pneg %p263
        %p492 = pneg %p294
        %p493 = pneg %p291
        %s494 = sand.u32 %s281, 1
        %s495 = scalar_lea.sflag [#allocation7], %s494
        %s496 = sand.u32 %s281, 1
        %s497 = smul.addr %s496, 8
        %s498 = scalar_lea.vmem [#allocation14], %s497
        %v499 = vld [vmem:[%s426] sm:$0xff]
        %vm500 = vcmask 261120
        %v501 = vsel %vm500, %v499, 0.0
        %502 = vadd.xlane.f32.xlu0 %v501
        %v503 = vpop.xlane.xlu0 %502
        %v504 = vrcp.pop 32.0
        %v505 = vmul.f32 %v503, %v504
        %v506 = vsub.f32 %v499, %v505
        %v507 = vmul.f32 %v506, %v506
        %v508 = vsel %vm500, %v507, 0.0
        %509 = vadd.xlane.f32.xlu0 %v508
        %v510 = vpop.xlane.xlu0 %509
        %v511 = vmul.f32 %v510, %v504
        %v512 = vadd.f32 %v511, 1e-05
        %v513 = vrsqrt.pop %v512
        %v514 = vmul.f32 %v506, %v513
        %v515 = vld [vmem:[%s3] sm:$0x1]
        %v517 = vlaneseq
        %v518 = vshrl.u32 %v517, 7
        %v519 = vsub.s32 0, %v518
        %v520 = vrot.slane %v515, %v519
        %v522 = vmul.f32 %v514, %v520
        %v523 = vld [vmem:[%s4] sm:$0x1]
        %v525 = vlaneseq
        %v526 = vshrl.u32 %v525, 7
        %v527 = vsub.s32 0, %v526
        %v528 = vrot.slane %v523, %v527
        %v530 = vadd.f32 %v522, %v528
        %v531 = vld [vmem:[#allocation11] sm:$0xff]
        %v532 = vld [vmem:[#allocation11 + $0x8] sm:$0xff]
        %v533 = vld [vmem:[#allocation11 + $0x10] sm:$0xff]
        %v534 = vld [vmem:[#allocation11 + $0x18] sm:$0xff]
        %v535 = vld [vmem:[%s6] sm:$0x1]
        %v537 = vlaneseq
        %v538 = vshrl.u32 %v537, 7
        %v539 = vsub.s32 0, %v538
        %v540 = vrot.slane %v535, %v539
        %v543 = vsel %vm500, %v530, 0
        %545 = vmatprep.subr.mxu0 0.0
        %546 = vmatpush1.msra.mxu0 0.0
        %547 = vmatprep.subr.mxu0 0.0
        %548 = vmatpush1.msra.mxu0 0.0
        %549 = vmatprep.subr.mxu0 0.0
        %550 = vmatpush1.msra.mxu0 0.0
        %551 = vmatprep.subr.mxu0 0.0
        %552 = vmatpush1.msra.mxu0 0.0
        %553 = vmatprep.subr.mxu0 0.0
        %554 = vmatpush1.msra.mxu0 0.0
        %555 = vmatprep.subr.mxu0 0.0
        %556 = vmatpush1.msra.mxu0 0.0
        %557 = vmatprep.subr.mxu0 0.0
        %558 = vmatpush1.msra.mxu0 0.0
        %559 = vmatprep.subr.mxu0 0.0
        %560 = vmatpush1.msra.mxu0 0.0
        %561 = vmatprep.subr.mxu0 0.0
        %562 = vmatpush1.msra.mxu0 0.0
        %563 = vmatprep.subr.mxu0 0.0
        %564 = vmatpush1.msra.mxu0 0.0
        %565 = vmatprep.subr.mxu0 0.0
        %566 = vmatpush1.msra.mxu0 0.0
        %567 = vmatprep.subr.mxu0 0.0
        %568 = vmatpush1.msra.mxu0 0.0
        %569 = vmatprep.subr.mxu0 0.0
        %570 = vmatpush1.msra.mxu0 %v534
        %571 = vmatprep.subr.mxu0 0.0
        %572 = vmatpush1.msra.mxu0 %v533
        %573 = vmatprep.subr.mxu0 0.0
        %574 = vmatpush1.msra.mxu0 %v532
        %575 = vmatprep.subr.mxu0 0.0
        %576 = vmatpush1.msra.mxu0 %v531
        %577 = vmatprep.subr.mxu0 0.0
        %578 = vmatpush2.msra.mxu0 0.0
        %579 = vmatprep.subr.mxu0 0.0
        %580 = vmatpush2.msra.mxu0 0.0
        %581 = vmatprep.subr.mxu0 0.0
        %582 = vmatpush2.msra.mxu0 0.0
        %583 = vmatprep.subr.mxu0 0.0
        %584 = vmatpush2.msra.mxu0 0.0
        %585 = vmatprep.subr.mxu0 0.0
        %586 = vmatpush2.msra.mxu0 0.0
        %587 = vmatprep.subr.mxu0 0.0
        %588 = vmatpush2.msra.mxu0 0.0
        %589 = vmatprep.subr.mxu0 0.0
        %590 = vmatpush2.msra.mxu0 0.0
        %591 = vmatprep.subr.mxu0 0.0
        %592 = vmatpush2.msra.mxu0 0.0
        %593 = vmatprep.subr.mxu0 0.0
        %594 = vmatpush2.msra.mxu0 0.0
        %595 = vmatprep.subr.mxu0 0.0
        %596 = vmatpush2.msra.mxu0 0.0
        %597 = vmatprep.subr.mxu0 0.0
        %598 = vmatpush2.msra.mxu0 0.0
        %599 = vmatprep.subr.mxu0 0.0
        %600 = vmatpush2.msra.mxu0 0.0
        %601 = vmatprep.subr.mxu0 0.0
        %602 = vmatpush2.msra.mxu0 0.0
        %603 = vmatprep.subr.mxu0 0.0
        %604 = vmatpush2.msra.mxu0 0.0
        %605 = vmatprep.subr.mxu0 0.0
        %606 = vmatpush2.msra.mxu0 0.0
        %607 = vmatprep.subr.mxu0 0.0
        %608 = vmatpush2.msra.mxu0 0.0
        %609 = vmatprep.mubr.f32.mxu0 0.0
        %610 = vmatmul.mubr.f32.gmra.mxu0 %v543
        %v611 = vpop.f32.mrf.mxu0
        %v612 = vadd.f32 %v540, %v611
        %v613 = vpop.f32.mrf.mxu0
        %614 = vdwg.mxu0
        %615 = vst.msk [vmem:[#allocation2] sm:$0xff] %vm500, %v612
        %v616 = vld [vmem:[#allocation2] sm:$0xff]
        %v617 = vld [vmem:[%s435] sm:$0xff]
        %v618 = vld [vmem:[%s435 + $0x8] sm:$0xff]
        %v619 = vld [vmem:[%s444] sm:$0xff]
        %v620 = vld [vmem:[%s444 + $0x8] sm:$0xff]
        %vm621 = vcmask 64512
        %v623 = vsel %vm621, %v616, 0
        %v626 = vsel %vm621, %v617, 0
        %v629 = vsel %vm621, %v618, 0
        %631 = vmatprep.subr.mxu0 0.0
        %632 = vmatpush1.xpose.msra.mxu0 0.0
        %633 = vmatprep.subr.mxu0 0.0
        %634 = vmatpush1.xpose.msra.mxu0 0.0
        %635 = vmatprep.subr.mxu0 0.0
        %636 = vmatpush1.xpose.msra.mxu0 0.0
        %637 = vmatprep.subr.mxu0 0.0
        %638 = vmatpush1.xpose.msra.mxu0 0.0
        %639 = vmatprep.subr.mxu0 0.0
        %640 = vmatpush1.xpose.msra.mxu0 0.0
        %641 = vmatprep.subr.mxu0 0.0
        %642 = vmatpush1.xpose.msra.mxu0 0.0
        %643 = vmatprep.subr.mxu0 0.0
        %644 = vmatpush1.xpose.msra.mxu0 0.0
        %645 = vmatprep.subr.mxu0 0.0
        %646 = vmatpush1.xpose.msra.mxu0 0.0
        %647 = vmatprep.subr.mxu0 0.0
        %648 = vmatpush1.xpose.msra.mxu0 0.0
        %649 = vmatprep.subr.mxu0 0.0
        %650 = vmatpush1.xpose.msra.mxu0 0.0
        %651 = vmatprep.subr.mxu0 0.0
        %652 = vmatpush1.xpose.msra.mxu0 0.0
        %653 = vmatprep.subr.mxu0 0.0
        %654 = vmatpush1.xpose.msra.mxu0 0.0
        %655 = vmatprep.subr.mxu0 0.0
        %656 = vmatpush1.xpose.msra.mxu0 0.0
        %657 = vmatprep.subr.mxu0 0.0
        %658 = vmatpush1.xpose.msra.mxu0 0.0
        %659 = vmatprep.subr.mxu0 0.0
        %660 = vmatpush1.xpose.msra.mxu0 %v629
        %661 = vmatprep.subr.mxu0 0.0
        %662 = vmatpush1.xpose.msra.mxu0 %v626
        %663 = vmatprep.subr.mxu0 0.0
        %664 = vmatpush2.xpose.msra.mxu0 0.0
        %665 = vmatprep.subr.mxu0 0.0
        %666 = vmatpush2.xpose.msra.mxu0 0.0
        %667 = vmatprep.subr.mxu0 0.0
        %668 = vmatpush2.xpose.msra.mxu0 0.0
        %669 = vmatprep.subr.mxu0 0.0
        %670 = vmatpush2.xpose.msra.mxu0 0.0
        %671 = vmatprep.subr.mxu0 0.0
        %672 = vmatpush2.xpose.msra.mxu0 0.0
        %673 = vmatprep.subr.mxu0 0.0
        %674 = vmatpush2.xpose.msra.mxu0 0.0
        %675 = vmatprep.subr.mxu0 0.0
        %676 = vmatpush2.xpose.msra.mxu0 0.0
        %677 = vmatprep.subr.mxu0 0.0
        %678 = vmatpush2.xpose.msra.mxu0 0.0
        %679 = vmatprep.subr.mxu0 0.0
        %680 = vmatpush2.xpose.msra.mxu0 0.0
        %681 = vmatprep.subr.mxu0 0.0
        %682 = vmatpush2.xpose.msra.mxu0 0.0
        %683 = vmatprep.subr.mxu0 0.0
        %684 = vmatpush2.xpose.msra.mxu0 0.0
        %685 = vmatprep.subr.mxu0 0.0
        %686 = vmatpush2.xpose.msra.mxu0 0.0
        %687 = vmatprep.subr.mxu0 0.0
        %688 = vmatpush2.xpose.msra.mxu0 0.0
        %689 = vmatprep.subr.mxu0 0.0
        %690 = vmatpush2.xpose.msra.mxu0 0.0
        %691 = vmatprep.subr.mxu0 0.0
        %692 = vmatpush2.xpose.msra.mxu0 0.0
        %693 = vmatprep.subr.mxu0 0.0
        %694 = vmatpush2.xpose.msra.mxu0 0.0
        %695 = vmatprep.mubr.f32.mxu0 0.0
        %696 = vmatmul.mubr.f32.gmra.mxu0 %v623
        %v697 = vpop.f32.mrf.mxu0
        %v698 = vadd.f32 0.0, %v697
        %v699 = vpop.f32.mrf.mxu0
        %700 = vdwg.mxu0
        %vm701 = vcmask 130048
        %v702 = vsel %vm701, %v698, -inf
        %703 = vmax.xlane.f32.xlu0 %v702
        %v704 = vpop.xlane.xlu0 %703
        %v705 = vsub.f32 %v698, %v704
        %v706 = vmul.f32 %v705, 1.442695
        %v707 = vpow.pop %v706
        %v708 = vsel %vm701, %v707, 0.0
        %709 = vadd.xlane.f32.xlu0 %v708
        %v710 = vpop.xlane.xlu0 %709
        %v711 = vrcp.pop %v710
        %v712 = vmul.f32 %v707, %v711
        %v714 = vsel %vm701, %v712, 0
        %716 = vmatprep.subr.mxu0 0.0
        %717 = vmatpush1.msra.mxu0 0.0
        %718 = vmatprep.subr.mxu0 0.0
        %719 = vmatpush1.msra.mxu0 0.0
        %720 = vmatprep.subr.mxu0 0.0
        %721 = vmatpush1.msra.mxu0 0.0
        %722 = vmatprep.subr.mxu0 0.0
        %723 = vmatpush1.msra.mxu0 0.0
        %724 = vmatprep.subr.mxu0 0.0
        %725 = vmatpush1.msra.mxu0 0.0
        %726 = vmatprep.subr.mxu0 0.0
        %727 = vmatpush1.msra.mxu0 0.0
        %728 = vmatprep.subr.mxu0 0.0
        %729 = vmatpush1.msra.mxu0 0.0
        %730 = vmatprep.subr.mxu0 0.0
        %731 = vmatpush1.msra.mxu0 0.0
        %732 = vmatprep.subr.mxu0 0.0
        %733 = vmatpush1.msra.mxu0 0.0
        %734 = vmatprep.subr.mxu0 0.0
        %735 = vmatpush1.msra.mxu0 0.0
        %736 = vmatprep.subr.mxu0 0.0
        %737 = vmatpush1.msra.mxu0 0.0
        %738 = vmatprep.subr.mxu0 0.0
        %739 = vmatpush1.msra.mxu0 0.0
        %740 = vmatprep.subr.mxu0 0.0
        %741 = vmatpush1.msra.mxu0 0.0
        %742 = vmatprep.subr.mxu0 0.0
        %743 = vmatpush1.msra.mxu0 0.0
        %744 = vmatprep.subr.mxu0 0.0
        %745 = vmatpush1.msra.mxu0 %v620
        %746 = vmatprep.subr.mxu0 0.0
        %747 = vmatpush1.msra.mxu0 %v619
        %748 = vmatprep.subr.mxu0 0.0
        %749 = vmatpush2.msra.mxu0 0.0
        %750 = vmatprep.subr.mxu0 0.0
        %751 = vmatpush2.msra.mxu0 0.0
        %752 = vmatprep.subr.mxu0 0.0
        %753 = vmatpush2.msra.mxu0 0.0
        %754 = vmatprep.subr.mxu0 0.0
        %755 = vmatpush2.msra.mxu0 0.0
        %756 = vmatprep.subr.mxu0 0.0
        %757 = vmatpush2.msra.mxu0 0.0
        %758 = vmatprep.subr.mxu0 0.0
        %759 = vmatpush2.msra.mxu0 0.0
        %760 = vmatprep.subr.mxu0 0.0
        %761 = vmatpush2.msra.mxu0 0.0
        %762 = vmatprep.subr.mxu0 0.0
        %763 = vmatpush2.msra.mxu0 0.0
        %764 = vmatprep.subr.mxu0 0.0
        %765 = vmatpush2.msra.mxu0 0.0
        %766 = vmatprep.subr.mxu0 0.0
        %767 = vmatpush2.msra.mxu0 0.0
        %768 = vmatprep.subr.mxu0 0.0
        %769 = vmatpush2.msra.mxu0 0.0
        %770 = vmatprep.subr.mxu0 0.0
        %771 = vmatpush2.msra.mxu0 0.0
        %772 = vmatprep.subr.mxu0 0.0
        %773 = vmatpush2.msra.mxu0 0.0
        %774 = vmatprep.subr.mxu0 0.0
        %775 = vmatpush2.msra.mxu0 0.0
        %776 = vmatprep.subr.mxu0 0.0
        %777 = vmatpush2.msra.mxu0 0.0
        %778 = vmatprep.subr.mxu0 0.0
        %779 = vmatpush2.msra.mxu0 0.0
        %780 = vmatprep.mubr.f32.mxu0 0.0
        %781 = vmatmul.mubr.f32.gmra.mxu0 %v714
        %v782 = vpop.f32.mrf.mxu0
        %v783 = vadd.f32 0.0, %v782
        %v784 = vpop.f32.mrf.mxu0
        %785 = vdwg.mxu0
        %786 = vst.msk [vmem:[#allocation3] sm:$0xff] %vm621, %v783
        %v787 = vld [vmem:[#allocation2] sm:$0xff]
        %v788 = vld [vmem:[%s435] sm:$0xff]
        %v789 = vld [vmem:[%s435 + $0x8] sm:$0xff]
        %v790 = vld [vmem:[%s444] sm:$0xff]
        %v791 = vld [vmem:[%s444 + $0x8] sm:$0xff]
        %793 = vrot.lane.b32.xlu0 %v787, 120
        %v794 = vpop.permute.xlu0 %793
        %797 = vrot.lane.b32.xlu0 %v788, 120
        %v798 = vpop.permute.xlu0 %797
        %799 = vrot.lane.b32.xlu0 %v789, 120
        %v800 = vpop.permute.xlu0 %799
        %v801 = vsel %vm621, %v794, 0
        %v803 = vsel %vm621, %v798, 0
        %v805 = vsel %vm621, %v800, 0
        %807 = vmatprep.subr.mxu0 0.0
        %808 = vmatpush1.xpose.msra.mxu0 0.0
        %809 = vmatprep.subr.mxu0 0.0
        %810 = vmatpush1.xpose.msra.mxu0 0.0
        %811 = vmatprep.subr.mxu0 0.0
        %812 = vmatpush1.xpose.msra.mxu0 0.0
        %813 = vmatprep.subr.mxu0 0.0
        %814 = vmatpush1.xpose.msra.mxu0 0.0
        %815 = vmatprep.subr.mxu0 0.0
        %816 = vmatpush1.xpose.msra.mxu0 0.0
        %817 = vmatprep.subr.mxu0 0.0
        %818 = vmatpush1.xpose.msra.mxu0 0.0
        %819 = vmatprep.subr.mxu0 0.0
        %820 = vmatpush1.xpose.msra.mxu0 0.0
        %821 = vmatprep.subr.mxu0 0.0
        %822 = vmatpush1.xpose.msra.mxu0 0.0
        %823 = vmatprep.subr.mxu0 0.0
        %824 = vmatpush1.xpose.msra.mxu0 0.0
        %825 = vmatprep.subr.mxu0 0.0
        %826 = vmatpush1.xpose.msra.mxu0 0.0
        %827 = vmatprep.subr.mxu0 0.0
        %828 = vmatpush1.xpose.msra.mxu0 0.0
        %829 = vmatprep.subr.mxu0 0.0
        %830 = vmatpush1.xpose.msra.mxu0 0.0
        %831 = vmatprep.subr.mxu0 0.0
        %832 = vmatpush1.xpose.msra.mxu0 0.0
        %833 = vmatprep.subr.mxu0 0.0
        %834 = vmatpush1.xpose.msra.mxu0 0.0
        %835 = vmatprep.subr.mxu0 0.0
        %836 = vmatpush1.xpose.msra.mxu0 %v805
        %837 = vmatprep.subr.mxu0 0.0
        %838 = vmatpush1.xpose.msra.mxu0 %v803
        %839 = vmatprep.subr.mxu0 0.0
        %840 = vmatpush2.xpose.msra.mxu0 0.0
        %841 = vmatprep.subr.mxu0 0.0
        %842 = vmatpush2.xpose.msra.mxu0 0.0
        %843 = vmatprep.subr.mxu0 0.0
        %844 = vmatpush2.xpose.msra.mxu0 0.0
        %845 = vmatprep.subr.mxu0 0.0
        %846 = vmatpush2.xpose.msra.mxu0 0.0
        %847 = vmatprep.subr.mxu0 0.0
        %848 = vmatpush2.xpose.msra.mxu0 0.0
        %849 = vmatprep.subr.mxu0 0.0
        %850 = vmatpush2.xpose.msra.mxu0 0.0
        %851 = vmatprep.subr.mxu0 0.0
        %852 = vmatpush2.xpose.msra.mxu0 0.0
        %853 = vmatprep.subr.mxu0 0.0
        %854 = vmatpush2.xpose.msra.mxu0 0.0
        %855 = vmatprep.subr.mxu0 0.0
        %856 = vmatpush2.xpose.msra.mxu0 0.0
        %857 = vmatprep.subr.mxu0 0.0
        %858 = vmatpush2.xpose.msra.mxu0 0.0
        %859 = vmatprep.subr.mxu0 0.0
        %860 = vmatpush2.xpose.msra.mxu0 0.0
        %861 = vmatprep.subr.mxu0 0.0
        %862 = vmatpush2.xpose.msra.mxu0 0.0
        %863 = vmatprep.subr.mxu0 0.0
        %864 = vmatpush2.xpose.msra.mxu0 0.0
        %865 = vmatprep.subr.mxu0 0.0
        %866 = vmatpush2.xpose.msra.mxu0 0.0
        %867 = vmatprep.subr.mxu0 0.0
        %868 = vmatpush2.xpose.msra.mxu0 0.0
        %869 = vmatprep.subr.mxu0 0.0
        %870 = vmatpush2.xpose.msra.mxu0 0.0
        %871 = vmatprep.mubr.f32.mxu0 0.0
        %872 = vmatmul.mubr.f32.gmra.mxu0 %v801
        %v873 = vpop.f32.mrf.mxu0
        %v874 = vadd.f32 0.0, %v873
        %v875 = vpop.f32.mrf.mxu0
        %876 = vdwg.mxu0
        %v877 = vsel %vm701, %v874, -inf
        %878 = vmax.xlane.f32.xlu0 %v877
        %v879 = vpop.xlane.xlu0 %878
        %v880 = vsub.f32 %v874, %v879
        %v881 = vmul.f32 %v880, 1.442695
        %v882 = vpow.pop %v881
        %v883 = vsel %vm701, %v882, 0.0
        %884 = vadd.xlane.f32.xlu0 %v883
        %v885 = vpop.xlane.xlu0 %884
        %v886 = vrcp.pop %v885
        %v887 = vmul.f32 %v882, %v886
        %890 = vrot.lane.b32.xlu0 %v790, 120
        %v891 = vpop.permute.xlu0 %890
        %892 = vrot.lane.b32.xlu0 %v791, 120
        %v893 = vpop.permute.xlu0 %892
        %v897 = vsel %vm701, %v887, 0
        %899 = vmatprep.subr.mxu0 0.0
        %900 = vmatpush1.msra.mxu0 0.0
        %901 = vmatprep.subr.mxu0 0.0
        %902 = vmatpush1.msra.mxu0 0.0
        %903 = vmatprep.subr.mxu0 0.0
        %904 = vmatpush1.msra.mxu0 0.0
        %905 = vmatprep.subr.mxu0 0.0
        %906 = vmatpush1.msra.mxu0 0.0
        %907 = vmatprep.subr.mxu0 0.0
        %908 = vmatpush1.msra.mxu0 0.0
        %909 = vmatprep.subr.mxu0 0.0
        %910 = vmatpush1.msra.mxu0 0.0
        %911 = vmatprep.subr.mxu0 0.0
        %912 = vmatpush1.msra.mxu0 0.0
        %913 = vmatprep.subr.mxu0 0.0
        %914 = vmatpush1.msra.mxu0 0.0
        %915 = vmatprep.subr.mxu0 0.0
        %916 = vmatpush1.msra.mxu0 0.0
        %917 = vmatprep.subr.mxu0 0.0
        %918 = vmatpush1.msra.mxu0 0.0
        %919 = vmatprep.subr.mxu0 0.0
        %920 = vmatpush1.msra.mxu0 0.0
        %921 = vmatprep.subr.mxu0 0.0
        %922 = vmatpush1.msra.mxu0 0.0
        %923 = vmatprep.subr.mxu0 0.0
        %924 = vmatpush1.msra.mxu0 0.0
        %925 = vmatprep.subr.mxu0 0.0
        %926 = vmatpush1.msra.mxu0 0.0
        %927 = vmatprep.subr.mxu0 0.0
        %928 = vmatpush1.msra.mxu0 %v893
        %929 = vmatprep.subr.mxu0 0.0
        %930 = vmatpush1.msra.mxu0 %v891
        %931 = vmatprep.subr.mxu0 0.0
        %932 = vmatpush2.msra.mxu0 0.0
        %933 = vmatprep.subr.mxu0 0.0
        %934 = vmatpush2.msra.mxu0 0.0
        %935 = vmatprep.subr.mxu0 0.0
        %936 = vmatpush2.msra.mxu0 0.0
        %937 = vmatprep.subr.mxu0 0.0
        %938 = vmatpush2.msra.mxu0 0.0
        %939 = vmatprep.subr.mxu0 0.0
        %940 = vmatpush2.msra.mxu0 0.0
        %941 = vmatprep.subr.mxu0 0.0
        %942 = vmatpush2.msra.mxu0 0.0
        %943 = vmatprep.subr.mxu0 0.0
        %944 = vmatpush2.msra.mxu0 0.0
        %945 = vmatprep.subr.mxu0 0.0
        %946 = vmatpush2.msra.mxu0 0.0
        %947 = vmatprep.subr.mxu0 0.0
        %948 = vmatpush2.msra.mxu0 0.0
        %949 = vmatprep.subr.mxu0 0.0
        %950 = vmatpush2.msra.mxu0 0.0
        %951 = vmatprep.subr.mxu0 0.0
        %952 = vmatpush2.msra.mxu0 0.0
        %953 = vmatprep.subr.mxu0 0.0
        %954 = vmatpush2.msra.mxu0 0.0
        %955 = vmatprep.subr.mxu0 0.0
        %956 = vmatpush2.msra.mxu0 0.0
        %957 = vmatprep.subr.mxu0 0.0
        %958 = vmatpush2.msra.mxu0 0.0
        %959 = vmatprep.subr.mxu0 0.0
        %960 = vmatpush2.msra.mxu0 0.0
        %961 = vmatprep.subr.mxu0 0.0
        %962 = vmatpush2.msra.mxu0 0.0
        %963 = vmatprep.mubr.f32.mxu0 0.0
        %964 = vmatmul.mubr.f32.gmra.mxu0 %v897
        %v965 = vpop.f32.mrf.mxu0
        %v966 = vadd.f32 0.0, %v965
        %v967 = vpop.f32.mrf.mxu0
        %968 = vdwg.mxu0
        %970 = vrot.lane.b32.xlu0 %v966, 8
        %v971 = vpop.permute.xlu0 %970
        %vm973 = vcmask 130112
        %974 = vst.msk [vmem:[#allocation3] sm:$0xff] %vm973, %v971
        %v975 = vld [vmem:[#allocation2] sm:$0xff]
        %v976 = vld [vmem:[%s435] sm:$0xff]
        %v977 = vld [vmem:[%s435 + $0x8] sm:$0xff]
        %v978 = vld [vmem:[%s444] sm:$0xff]
        %v979 = vld [vmem:[%s444 + $0x8] sm:$0xff]
        %981 = vrot.lane.b32.xlu0 %v975, 112
        %v982 = vpop.permute.xlu0 %981
        %985 = vrot.lane.b32.xlu0 %v976, 112
        %v986 = vpop.permute.xlu0 %985
        %987 = vrot.lane.b32.xlu0 %v977, 112
        %v988 = vpop.permute.xlu0 %987
        %v989 = vsel %vm621, %v982, 0
        %v991 = vsel %vm621, %v986, 0
        %v993 = vsel %vm621, %v988, 0
        %995 = vmatprep.subr.mxu0 0.0
        %996 = vmatpush1.xpose.msra.mxu0 0.0
        %997 = vmatprep.subr.mxu0 0.0
        %998 = vmatpush1.xpose.msra.mxu0 0.0
        %999 = vmatprep.subr.mxu0 0.0
        %1000 = vmatpush1.xpose.msra.mxu0 0.0
        %1001 = vmatprep.subr.mxu0 0.0
        %1002 = vmatpush1.xpose.msra.mxu0 0.0
        %1003 = vmatprep.subr.mxu0 0.0
        %1004 = vmatpush1.xpose.msra.mxu0 0.0
        %1005 = vmatprep.subr.mxu0 0.0
        %1006 = vmatpush1.xpose.msra.mxu0 0.0
        %1007 = vmatprep.subr.mxu0 0.0
        %1008 = vmatpush1.xpose.msra.mxu0 0.0
        %1009 = vmatprep.subr.mxu0 0.0
        %1010 = vmatpush1.xpose.msra.mxu0 0.0
        %1011 = vmatprep.subr.mxu0 0.0
        %1012 = vmatpush1.xpose.msra.mxu0 0.0
        %1013 = vmatprep.subr.mxu0 0.0
        %1014 = vmatpush1.xpose.msra.mxu0 0.0
        %1015 = vmatprep.subr.mxu0 0.0
        %1016 = vmatpush1.xpose.msra.mxu0 0.0
        %1017 = vmatprep.subr.mxu0 0.0
        %1018 = vmatpush1.xpose.msra.mxu0 0.0
        %1019 = vmatprep.subr.mxu0 0.0
        %1020 = vmatpush1.xpose.msra.mxu0 0.0
        %1021 = vmatprep.subr.mxu0 0.0
        %1022 = vmatpush1.xpose.msra.mxu0 0.0
        %1023 = vmatprep.subr.mxu0 0.0
        %1024 = vmatpush1.xpose.msra.mxu0 %v993
        %1025 = vmatprep.subr.mxu0 0.0
        %1026 = vmatpush1.xpose.msra.mxu0 %v991
        %1027 = vmatprep.subr.mxu0 0.0
        %1028 = vmatpush2.xpose.msra.mxu0 0.0
        %1029 = vmatprep.subr.mxu0 0.0
        %1030 = vmatpush2.xpose.msra.mxu0 0.0
        %1031 = vmatprep.subr.mxu0 0.0
        %1032 = vmatpush2.xpose.msra.mxu0 0.0
        %1033 = vmatprep.subr.mxu0 0.0
        %1034 = vmatpush2.xpose.msra.mxu0 0.0
        %1035 = vmatprep.subr.mxu0 0.0
        %1036 = vmatpush2.xpose.msra.mxu0 0.0
        %1037 = vmatprep.subr.mxu0 0.0
        %1038 = vmatpush2.xpose.msra.mxu0 0.0
        %1039 = vmatprep.subr.mxu0 0.0
        %1040 = vmatpush2.xpose.msra.mxu0 0.0
        %1041 = vmatprep.subr.mxu0 0.0
        %1042 = vmatpush2.xpose.msra.mxu0 0.0
        %1043 = vmatprep.subr.mxu0 0.0
        %1044 = vmatpush2.xpose.msra.mxu0 0.0
        %1045 = vmatprep.subr.mxu0 0.0
        %1046 = vmatpush2.xpose.msra.mxu0 0.0
        %1047 = vmatprep.subr.mxu0 0.0
        %1048 = vmatpush2.xpose.msra.mxu0 0.0
        %1049 = vmatprep.subr.mxu0 0.0
        %1050 = vmatpush2.xpose.msra.mxu0 0.0
        %1051 = vmatprep.subr.mxu0 0.0
        %1052 = vmatpush2.xpose.msra.mxu0 0.0
        %1053 = vmatprep.subr.mxu0 0.0
        %1054 = vmatpush2.xpose.msra.mxu0 0.0
        %1055 = vmatprep.subr.mxu0 0.0
        %1056 = vmatpush2.xpose.msra.mxu0 0.0
        %1057 = vmatprep.subr.mxu0 0.0
        %1058 = vmatpush2.xpose.msra.mxu0 0.0
        %1059 = vmatprep.mubr.f32.mxu0 0.0
        %1060 = vmatmul.mubr.f32.gmra.mxu0 %v989
        %v1061 = vpop.f32.mrf.mxu0
        %v1062 = vadd.f32 0.0, %v1061
        %v1063 = vpop.f32.mrf.mxu0
        %1064 = vdwg.mxu0
        %v1065 = vsel %vm701, %v1062, -inf
        %1066 = vmax.xlane.f32.xlu0 %v1065
        %v1067 = vpop.xlane.xlu0 %1066
        %v1068 = vsub.f32 %v1062, %v1067
        %v1069 = vmul.f32 %v1068, 1.442695
        %v1070 = vpow.pop %v1069
        %v1071 = vsel %vm701, %v1070, 0.0
        %1072 = vadd.xlane.f32.xlu0 %v1071
        %v1073 = vpop.xlane.xlu0 %1072
        %v1074 = vrcp.pop %v1073
        %v1075 = vmul.f32 %v1070, %v1074
        %1078 = vrot.lane.b32.xlu0 %v978, 112
        %v1079 = vpop.permute.xlu0 %1078
        %1080 = vrot.lane.b32.xlu0 %v979, 112
        %v1081 = vpop.permute.xlu0 %1080
        %v1085 = vsel %vm701, %v1075, 0
        %1087 = vmatprep.subr.mxu0 0.0
        %1088 = vmatpush1.msra.mxu0 0.0
        %1089 = vmatprep.subr.mxu0 0.0
        %1090 = vmatpush1.msra.mxu0 0.0
        %1091 = vmatprep.subr.mxu0 0.0
        %1092 = vmatpush1.msra.mxu0 0.0
        %1093 = vmatprep.subr.mxu0 0.0
        %1094 = vmatpush1.msra.mxu0 0.0
        %1095 = vmatprep.subr.mxu0 0.0
        %1096 = vmatpush1.msra.mxu0 0.0
        %1097 = vmatprep.subr.mxu0 0.0
        %1098 = vmatpush1.msra.mxu0 0.0
        %1099 = vmatprep.subr.mxu0 0.0
        %1100 = vmatpush1.msra.mxu0 0.0
        %1101 = vmatprep.subr.mxu0 0.0
        %1102 = vmatpush1.msra.mxu0 0.0
        %1103 = vmatprep.subr.mxu0 0.0
        %1104 = vmatpush1.msra.mxu0 0.0
        %1105 = vmatprep.subr.mxu0 0.0
        %1106 = vmatpush1.msra.mxu0 0.0
        %1107 = vmatprep.subr.mxu0 0.0
        %1108 = vmatpush1.msra.mxu0 0.0
        %1109 = vmatprep.subr.mxu0 0.0
        %1110 = vmatpush1.msra.mxu0 0.0
        %1111 = vmatprep.subr.mxu0 0.0
        %1112 = vmatpush1.msra.mxu0 0.0
        %1113 = vmatprep.subr.mxu0 0.0
        %1114 = vmatpush1.msra.mxu0 0.0
        %1115 = vmatprep.subr.mxu0 0.0
        %1116 = vmatpush1.msra.mxu0 %v1081
        %1117 = vmatprep.subr.mxu0 0.0
        %1118 = vmatpush1.msra.mxu0 %v1079
        %1119 = vmatprep.subr.mxu0 0.0
        %1120 = vmatpush2.msra.mxu0 0.0
        %1121 = vmatprep.subr.mxu0 0.0
        %1122 = vmatpush2.msra.mxu0 0.0
        %1123 = vmatprep.subr.mxu0 0.0
        %1124 = vmatpush2.msra.mxu0 0.0
        %1125 = vmatprep.subr.mxu0 0.0
        %1126 = vmatpush2.msra.mxu0 0.0
        %1127 = vmatprep.subr.mxu0 0.0
        %1128 = vmatpush2.msra.mxu0 0.0
        %1129 = vmatprep.subr.mxu0 0.0
        %1130 = vmatpush2.msra.mxu0 0.0
        %1131 = vmatprep.subr.mxu0 0.0
        %1132 = vmatpush2.msra.mxu0 0.0
        %1133 = vmatprep.subr.mxu0 0.0
        %1134 = vmatpush2.msra.mxu0 0.0
        %1135 = vmatprep.subr.mxu0 0.0
        %1136 = vmatpush2.msra.mxu0 0.0
        %1137 = vmatprep.subr.mxu0 0.0
        %1138 = vmatpush2.msra.mxu0 0.0
        %1139 = vmatprep.subr.mxu0 0.0
        %1140 = vmatpush2.msra.mxu0 0.0
        %1141 = vmatprep.subr.mxu0 0.0
        %1142 = vmatpush2.msra.mxu0 0.0
        %1143 = vmatprep.subr.mxu0 0.0
        %1144 = vmatpush2.msra.mxu0 0.0
        %1145 = vmatprep.subr.mxu0 0.0
        %1146 = vmatpush2.msra.mxu0 0.0
        %1147 = vmatprep.subr.mxu0 0.0
        %1148 = vmatpush2.msra.mxu0 0.0
        %1149 = vmatprep.subr.mxu0 0.0
        %1150 = vmatpush2.msra.mxu0 0.0
        %1151 = vmatprep.mubr.f32.mxu0 0.0
        %1152 = vmatmul.mubr.f32.gmra.mxu0 %v1085
        %v1153 = vpop.f32.mrf.mxu0
        %v1154 = vadd.f32 0.0, %v1153
        %v1155 = vpop.f32.mrf.mxu0
        %1156 = vdwg.mxu0
        %1158 = vrot.lane.b32.xlu0 %v1154, 16
        %v1159 = vpop.permute.xlu0 %1158
        %vm1161 = vcmask 195712
        %1162 = vst.msk [vmem:[#allocation3] sm:$0xff] %vm1161, %v1159
        %v1163 = vld [vmem:[#allocation2] sm:$0xff]
        %v1164 = vld [vmem:[%s435] sm:$0xff]
        %v1165 = vld [vmem:[%s435 + $0x8] sm:$0xff]
        %v1166 = vld [vmem:[%s444] sm:$0xff]
        %v1167 = vld [vmem:[%s444 + $0x8] sm:$0xff]
        %1169 = vrot.lane.b32.xlu0 %v1163, 104
        %v1170 = vpop.permute.xlu0 %1169
        %1173 = vrot.lane.b32.xlu0 %v1164, 104
        %v1174 = vpop.permute.xlu0 %1173
        %1175 = vrot.lane.b32.xlu0 %v1165, 104
        %v1176 = vpop.permute.xlu0 %1175
        %v1177 = vsel %vm621, %v1170, 0
        %v1179 = vsel %vm621, %v1174, 0
        %v1181 = vsel %vm621, %v1176, 0
        %1183 = vmatprep.subr.mxu0 0.0
        %1184 = vmatpush1.xpose.msra.mxu0 0.0
        %1185 = vmatprep.subr.mxu0 0.0
        %1186 = vmatpush1.xpose.msra.mxu0 0.0
        %1187 = vmatprep.subr.mxu0 0.0
        %1188 = vmatpush1.xpose.msra.mxu0 0.0
        %1189 = vmatprep.subr.mxu0 0.0
        %1190 = vmatpush1.xpose.msra.mxu0 0.0
        %1191 = vmatprep.subr.mxu0 0.0
        %1192 = vmatpush1.xpose.msra.mxu0 0.0
        %1193 = vmatprep.subr.mxu0 0.0
        %1194 = vmatpush1.xpose.msra.mxu0 0.0
        %1195 = vmatprep.subr.mxu0 0.0
        %1196 = vmatpush1.xpose.msra.mxu0 0.0
        %1197 = vmatprep.subr.mxu0 0.0
        %1198 = vmatpush1.xpose.msra.mxu0 0.0
        %1199 = vmatprep.subr.mxu0 0.0
        %1200 = vmatpush1.xpose.msra.mxu0 0.0
        %1201 = vmatprep.subr.mxu0 0.0
        %1202 = vmatpush1.xpose.msra.mxu0 0.0
        %1203 = vmatprep.subr.mxu0 0.0
        %1204 = vmatpush1.xpose.msra.mxu0 0.0
        %1205 = vmatprep.subr.mxu0 0.0
        %1206 = vmatpush1.xpose.msra.mxu0 0.0
        %1207 = vmatprep.subr.mxu0 0.0
        %1208 = vmatpush1.xpose.msra.mxu0 0.0
        %1209 = vmatprep.subr.mxu0 0.0
        %1210 = vmatpush1.xpose.msra.mxu0 0.0
        %1211 = vmatprep.subr.mxu0 0.0
        %1212 = vmatpush1.xpose.msra.mxu0 %v1181
        %1213 = vmatprep.subr.mxu0 0.0
        %1214 = vmatpush1.xpose.msra.mxu0 %v1179
        %1215 = vmatprep.subr.mxu0 0.0
        %1216 = vmatpush2.xpose.msra.mxu0 0.0
        %1217 = vmatprep.subr.mxu0 0.0
        %1218 = vmatpush2.xpose.msra.mxu0 0.0
        %1219 = vmatprep.subr.mxu0 0.0
        %1220 = vmatpush2.xpose.msra.mxu0 0.0
        %1221 = vmatprep.subr.mxu0 0.0
        %1222 = vmatpush2.xpose.msra.mxu0 0.0
        %1223 = vmatprep.subr.mxu0 0.0
        %1224 = vmatpush2.xpose.msra.mxu0 0.0
        %1225 = vmatprep.subr.mxu0 0.0
        %1226 = vmatpush2.xpose.msra.mxu0 0.0
        %1227 = vmatprep.subr.mxu0 0.0
        %1228 = vmatpush2.xpose.msra.mxu0 0.0
        %1229 = vmatprep.subr.mxu0 0.0
        %1230 = vmatpush2.xpose.msra.mxu0 0.0
        %1231 = vmatprep.subr.mxu0 0.0
        %1232 = vmatpush2.xpose.msra.mxu0 0.0
        %1233 = vmatprep.subr.mxu0 0.0
        %1234 = vmatpush2.xpose.msra.mxu0 0.0
        %1235 = vmatprep.subr.mxu0 0.0
        %1236 = vmatpush2.xpose.msra.mxu0 0.0
        %1237 = vmatprep.subr.mxu0 0.0
        %1238 = vmatpush2.xpose.msra.mxu0 0.0
        %1239 = vmatprep.subr.mxu0 0.0
        %1240 = vmatpush2.xpose.msra.mxu0 0.0
        %1241 = vmatprep.subr.mxu0 0.0
        %1242 = vmatpush2.xpose.msra.mxu0 0.0
        %1243 = vmatprep.subr.mxu0 0.0
        %1244 = vmatpush2.xpose.msra.mxu0 0.0
        %1245 = vmatprep.subr.mxu0 0.0
        %1246 = vmatpush2.xpose.msra.mxu0 0.0
        %1247 = vmatprep.mubr.f32.mxu0 0.0
        %1248 = vmatmul.mubr.f32.gmra.mxu0 %v1177
        %v1249 = vpop.f32.mrf.mxu0
        %v1250 = vadd.f32 0.0, %v1249
        %v1251 = vpop.f32.mrf.mxu0
        %1252 = vdwg.mxu0
        %v1253 = vsel %vm701, %v1250, -inf
        %1254 = vmax.xlane.f32.xlu0 %v1253
        %v1255 = vpop.xlane.xlu0 %1254
        %v1256 = vsub.f32 %v1250, %v1255
        %v1257 = vmul.f32 %v1256, 1.442695
        %v1258 = vpow.pop %v1257
        %v1259 = vsel %vm701, %v1258, 0.0
        %1260 = vadd.xlane.f32.xlu0 %v1259
        %v1261 = vpop.xlane.xlu0 %1260
        %v1262 = vrcp.pop %v1261
        %v1263 = vmul.f32 %v1258, %v1262
        %1266 = vrot.lane.b32.xlu0 %v1166, 104
        %v1267 = vpop.permute.xlu0 %1266
        %1268 = vrot.lane.b32.xlu0 %v1167, 104
        %v1269 = vpop.permute.xlu0 %1268
        %v1273 = vsel %vm701, %v1263, 0
        %1275 = vmatprep.subr.mxu0 0.0
        %1276 = vmatpush1.msra.mxu0 0.0
        %1277 = vmatprep.subr.mxu0 0.0
        %1278 = vmatpush1.msra.mxu0 0.0
        %1279 = vmatprep.subr.mxu0 0.0
        %1280 = vmatpush1.msra.mxu0 0.0
        %1281 = vmatprep.subr.mxu0 0.0
        %1282 = vmatpush1.msra.mxu0 0.0
        %1283 = vmatprep.subr.mxu0 0.0
        %1284 = vmatpush1.msra.mxu0 0.0
        %1285 = vmatprep.subr.mxu0 0.0
        %1286 = vmatpush1.msra.mxu0 0.0
        %1287 = vmatprep.subr.mxu0 0.0
        %1288 = vmatpush1.msra.mxu0 0.0
        %1289 = vmatprep.subr.mxu0 0.0
        %1290 = vmatpush1.msra.mxu0 0.0
        %1291 = vmatprep.subr.mxu0 0.0
        %1292 = vmatpush1.msra.mxu0 0.0
        %1293 = vmatprep.subr.mxu0 0.0
        %1294 = vmatpush1.msra.mxu0 0.0
        %1295 = vmatprep.subr.mxu0 0.0
        %1296 = vmatpush1.msra.mxu0 0.0
        %1297 = vmatprep.subr.mxu0 0.0
        %1298 = vmatpush1.msra.mxu0 0.0
        %1299 = vmatprep.subr.mxu0 0.0
        %1300 = vmatpush1.msra.mxu0 0.0
        %1301 = vmatprep.subr.mxu0 0.0
        %1302 = vmatpush1.msra.mxu0 0.0
        %1303 = vmatprep.subr.mxu0 0.0
        %1304 = vmatpush1.msra.mxu0 %v1269
        %1305 = vmatprep.subr.mxu0 0.0
        %1306 = vmatpush1.msra.mxu0 %v1267
        %1307 = vmatprep.subr.mxu0 0.0
        %1308 = vmatpush2.msra.mxu0 0.0
        %1309 = vmatprep.subr.mxu0 0.0
        %1310 = vmatpush2.msra.mxu0 0.0
        %1311 = vmatprep.subr.mxu0 0.0
        %1312 = vmatpush2.msra.mxu0 0.0
        %1313 = vmatprep.subr.mxu0 0.0
        %1314 = vmatpush2.msra.mxu0 0.0
        %1315 = vmatprep.subr.mxu0 0.0
        %1316 = vmatpush2.msra.mxu0 0.0
        %1317 = vmatprep.subr.mxu0 0.0
        %1318 = vmatpush2.msra.mxu0 0.0
        %1319 = vmatprep.subr.mxu0 0.0
        %1320 = vmatpush2.msra.mxu0 0.0
        %1321 = vmatprep.subr.mxu0 0.0
        %1322 = vmatpush2.msra.mxu0 0.0
        %1323 = vmatprep.subr.mxu0 0.0
        %1324 = vmatpush2.msra.mxu0 0.0
        %1325 = vmatprep.subr.mxu0 0.0
        %1326 = vmatpush2.msra.mxu0 0.0
        %1327 = vmatprep.subr.mxu0 0.0
        %1328 = vmatpush2.msra.mxu0 0.0
        %1329 = vmatprep.subr.mxu0 0.0
        %1330 = vmatpush2.msra.mxu0 0.0
        %1331 = vmatprep.subr.mxu0 0.0
        %1332 = vmatpush2.msra.mxu0 0.0
        %1333 = vmatprep.subr.mxu0 0.0
        %1334 = vmatpush2.msra.mxu0 0.0
        %1335 = vmatprep.subr.mxu0 0.0
        %1336 = vmatpush2.msra.mxu0 0.0
        %1337 = vmatprep.subr.mxu0 0.0
        %1338 = vmatpush2.msra.mxu0 0.0
        %1339 = vmatprep.mubr.f32.mxu0 0.0
        %1340 = vmatmul.mubr.f32.gmra.mxu0 %v1273
        %v1341 = vpop.f32.mrf.mxu0
        %v1342 = vadd.f32 0.0, %v1341
        %v1343 = vpop.f32.mrf.mxu0
        %1344 = vdwg.mxu0
        %1346 = vrot.lane.b32.xlu0 %v1342, 24
        %v1347 = vpop.permute.xlu0 %1346
        %vm1349 = vcmask 261312
        %1350 = vst.msk [vmem:[#allocation3] sm:$0xff] %vm1349, %v1347
        %v1351 = vld [vmem:[#allocation3] sm:$0xff]
        %v1352 = vld [vmem:[#allocation13] sm:$0xff]
        %v1353 = vld [vmem:[#allocation13 + $0x8] sm:$0xff]
        %v1354 = vld [vmem:[#allocation13 + $0x10] sm:$0xff]
        %v1355 = vld [vmem:[#allocation13 + $0x18] sm:$0xff]
        %v1356 = vld [vmem:[%s8] sm:$0x1]
        %v1358 = vlaneseq
        %v1359 = vshrl.u32 %v1358, 7
        %v1360 = vsub.s32 0, %v1359
        %v1361 = vrot.slane %v1356, %v1360
        %v1364 = vsel %vm500, %v1351, 0
        %1366 = vmatprep.subr.mxu0 0.0
        %1367 = vmatpush1.msra.mxu0 0.0
        %1368 = vmatprep.subr.mxu0 0.0
        %1369 = vmatpush1.msra.mxu0 0.0
        %1370 = vmatprep.subr.mxu0 0.0
        %1371 = vmatpush1.msra.mxu0 0.0
        %1372 = vmatprep.subr.mxu0 0.0
        %1373 = vmatpush1.msra.mxu0 0.0
        %1374 = vmatprep.subr.mxu0 0.0
        %1375 = vmatpush1.msra.mxu0 0.0
        %1376 = vmatprep.subr.mxu0 0.0
        %1377 = vmatpush1.msra.mxu0 0.0
        %1378 = vmatprep.subr.mxu0 0.0
        %1379 = vmatpush1.msra.mxu0 0.0
        %1380 = vmatprep.subr.mxu0 0.0
        %1381 = vmatpush1.msra.mxu0 0.0
        %1382 = vmatprep.subr.mxu0 0.0
        %1383 = vmatpush1.msra.mxu0 0.0
        %1384 = vmatprep.subr.mxu0 0.0
        %1385 = vmatpush1.msra.mxu0 0.0
        %1386 = vmatprep.subr.mxu0 0.0
        %1387 = vmatpush1.msra.mxu0 0.0
        %1388 = vmatprep.subr.mxu0 0.0
        %1389 = vmatpush1.msra.mxu0 0.0
        %1390 = vmatprep.subr.mxu0 0.0
        %1391 = vmatpush1.msra.mxu0 %v1355
        %1392 = vmatprep.subr.mxu0 0.0
        %1393 = vmatpush1.msra.mxu0 %v1354
        %1394 = vmatprep.subr.mxu0 0.0
        %1395 = vmatpush1.msra.mxu0 %v1353
        %1396 = vmatprep.subr.mxu0 0.0
        %1397 = vmatpush1.msra.mxu0 %v1352
        %1398 = vmatprep.subr.mxu0 0.0
        %1399 = vmatpush2.msra.mxu0 0.0
        %1400 = vmatprep.subr.mxu0 0.0
        %1401 = vmatpush2.msra.mxu0 0.0
        %1402 = vmatprep.subr.mxu0 0.0
        %1403 = vmatpush2.msra.mxu0 0.0
        %1404 = vmatprep.subr.mxu0 0.0
        %1405 = vmatpush2.msra.mxu0 0.0
        %1406 = vmatprep.subr.mxu0 0.0
        %1407 = vmatpush2.msra.mxu0 0.0
        %1408 = vmatprep.subr.mxu0 0.0
        %1409 = vmatpush2.msra.mxu0 0.0
        %1410 = vmatprep.subr.mxu0 0.0
        %1411 = vmatpush2.msra.mxu0 0.0
        %1412 = vmatprep.subr.mxu0 0.0
        %1413 = vmatpush2.msra.mxu0 0.0
        %1414 = vmatprep.subr.mxu0 0.0
        %1415 = vmatpush2.msra.mxu0 0.0
        %1416 = vmatprep.subr.mxu0 0.0
        %1417 = vmatpush2.msra.mxu0 0.0
        %1418 = vmatprep.subr.mxu0 0.0
        %1419 = vmatpush2.msra.mxu0 0.0
        %1420 = vmatprep.subr.mxu0 0.0
        %1421 = vmatpush2.msra.mxu0 0.0
        %1422 = vmatprep.subr.mxu0 0.0
        %1423 = vmatpush2.msra.mxu0 0.0
        %1424 = vmatprep.subr.mxu0 0.0
        %1425 = vmatpush2.msra.mxu0 0.0
        %1426 = vmatprep.subr.mxu0 0.0
        %1427 = vmatpush2.msra.mxu0 0.0
        %1428 = vmatprep.subr.mxu0 0.0
        %1429 = vmatpush2.msra.mxu0 0.0
        %1430 = vmatprep.mubr.f32.mxu0 0.0
        %1431 = vmatmul.mubr.f32.gmra.mxu0 %v1364
        %v1432 = vpop.f32.mrf.mxu0
        %v1433 = vadd.f32 %v1361, %v1432
        %v1434 = vpop.f32.mrf.mxu0
        %1435 = vdwg.mxu0
        %s1436 = sld [smem:[#allocation4]]
        %v1437 = vstv %s1436
        %v1438 = vmul.f32 %v1433, %v1437
        %1439 = vst.msk [vmem:[%s498] sm:$0xff] %vm500, %v1438
        %s1440 = sand.u32 %s281, 1
        %s1441 = scalar_lea.sflag [#allocation7], %s1440
        %s1442 = sand.u32 %s281, 1
        %s1443 = smul.addr %s1442, 8
        %s1444 = scalar_lea.vmem [#allocation14], %s1443
        // Predicated region
        $region81: #{tpu_custom_call.1} parent=59 // pred_check
          %p1445 = pneg %p291
        $region82: #{tpu_custom_call.1} parent=59 // pred_check_branch
          %1447 = sbr.rel (%p1445) target = $region84
        $region83: #{tpu_custom_call.1} parent=59 // pred_region
          %s1449 = ssub.s32 128, 128
          %1450 = vsyncadd %s1441, %s1449
          %s1451 = sadd.s32 %s37, %s36
          %s1452 = smul.addr %s1451, 128
          %s1453 = scalar_lea.hbm %s10, %s1452
          %s1455 = sshll.u32 %s1444, 4
          %s1456 = int_to_ptr.vmem [resolvable:$true] %s1455
          %1458 = dma.vmem_to_hbm [thread:$0]  %s1456, 128, %s1453, %s1441
        $region84: #{tpu_custom_call.1} parent=59 // pred_fallthru
          _
      $region60: #{tpu_custom_call.1} parent=5 // pred_fallthru
        _
      %p1459 = scmp.le.s32.totalorder 2, %s27
      // Predicated region
      $region85: #{tpu_custom_call.1} parent=5 // pred_check
        %p1460 = pneg %p1459
      $region86: #{tpu_custom_call.1} parent=5 // pred_check_branch
        %1462 = sbr.rel (%p1460) target = $region88
      $region87: #{tpu_custom_call.1} parent=5 // pred_region
        %s1463 = ssub.s32 %s27, 2
        // Predicated region
        $region89: #{tpu_custom_call.1} parent=87 // pred_check
          %p1464 = pneg %p297
        $region90: #{tpu_custom_call.1} parent=87 // pred_check_branch
          %1466 = sbr.rel (%p1464) target = $region92
        $region91: #{tpu_custom_call.1} parent=87 // pred_region
          %s1467 = sand.u32 %s282, 1
          %s1468 = scalar_lea.sflag [#allocation7], %s1467
          %s1469 = sand.u32 %s282, 1
          %s1470 = smul.addr %s1469, 8
          %s1471 = scalar_lea.vmem [#allocation14], %s1470
          %1472 = dma.done %s1468, 128
        $region92: #{tpu_custom_call.1} parent=87 // pred_fallthru
          _
      $region88: #{tpu_custom_call.1} parent=5 // pred_fallthru
        _
    $region6: #{tpu_custom_call.1} parent=1 // loop_footer
      %s31 = sadd.s32 1, %s27
    $region7: #{tpu_custom_call.1} parent=1 // loop_footer_branch
      %26 = sbr.rel target = $region3
    $region8: #{tpu_custom_call.1} parent=1 // loop_exit
      _
    %1473 = vsyncpa [#allocation6], 1
    %s1474 = scalar_lea.sflag [#allocation6], 1
    %1475 = vsyncpa %s1474, 1
    %1476 = vsyncpa [#allocation9], 1
    %s1477 = scalar_lea.sflag [#allocation9], 1
    %1478 = vsyncpa %s1477, 1
    %1479 = vsyncpa [#allocation12], 1
    %1480 = vsyncpa [#allocation7], 1
    %s1481 = scalar_lea.sflag [#allocation7], 1
    %1482 = vsyncpa %s1481, 1

</llo_original>
